<compile_context>
chip_gen: v5e
topology: v5e:2x2
jax: 0.10.0
libtpu: 0.0.40
codegen_flags: <defaults>
</compile_context>

<pallas_src>
from functools import partial

import jax
import jax.numpy as jnp
from jax.experimental import pallas as pl
from jax.experimental.pallas import tpu as pltpu


def _round_up(x, m):
    return (x + m - 1) // m * m


# ------------------------------------------------------------------------------------------
# Pass 1: sub-pixel transposed conv (one fat MXU matmul per image) + BN partial statistics
# ------------------------------------------------------------------------------------------
def conv_stats_kernel(xp_ref, w_ref, z_ref, stats_ref, *, Qh, Qw, T, Cin):
    # xp_ref    : (1, Hp, Wp, Cin)   padded NHWC input (one image), f32
    # w_ref     : (T*T*Cin, CO2)     packed sub-pixel weight matrix, f32
    # z_ref     : (1, Qh*Qw, CO2)    pre-BN conv output, bf16 (storage only)
    # stats_ref : (1, 2, CO2)        per-image [sum, sum_of_squares] over rows, f32
    x = xp_ref[0]                                            # (Hp, Wp, Cin) f32, no casts

    # In-VMEM im2col: T*T overlapping (Qh, Qw, Cin) windows concatenated on the channel
    # axis -> one (Qh*Qw, T*T*Cin) patch matrix (column order matches w_ref row order).
    cols = [x[uh:uh + Qh, uw:uw + Qw, :] for uh in range(T) for uw in range(T)]
    patches = jnp.concatenate(cols, axis=-1).reshape(Qh * Qw, T * T * Cin)

    # Single fat contraction producing all stride^2 output phases at once.
    # f32 x f32 -> f32 (portable; bf16 x bf16 dots are rejected by some execution paths).
    z = jnp.dot(patches, w_ref[...], preferred_element_type=jnp.float32)   # (QQ, CO2) f32

    # BN partial statistics from the f32 accumulator, BEFORE the storage downcast.
    stats_ref[0] = jnp.concatenate(
        [jnp.sum(z, axis=0, keepdims=True),
         jnp.sum(z * z, axis=0, keepdims=True)], axis=0)     # (2, CO2)

    # Store z in bf16: halves the intermediate HBM traffic between the two passes.
    z_ref[0] = z.astype(z_ref.dtype)


# ------------------------------------------------------------------------------------------
# Pass 2: apply global BatchNorm (scale * z + shift) and ReLU, row-tiled over N*QQ
# ------------------------------------------------------------------------------------------
def bn_relu_kernel(z_ref, scale_ref, shift_ref, y_ref):
    # z_ref : (ROWS, CO2) bf16 ; scale/shift : (1, CO2) f32 ; y_ref : (ROWS, CO2) f32
    z = z_ref[...].astype(jnp.float32)
    y = z * scale_ref[...] + shift_ref[...]
    y_ref[...] = jnp.maximum(y, 0.0)


def generator_block(x_nchw, weight, bias, gamma, beta, stride, eps=1e-5):
    """GeneratorBlock forward: ConvTranspose2d(stride) -> BatchNorm2d(training) -> ReLU.

    x_nchw : (N, Cin, H, W); weight : (Cin, Cout, K, K) (torch ConvTranspose2d layout);
    bias, gamma, beta : (Cout,).  Returns (N, Cout, OH, OW) float32 in NCHW.
    """
    N, Cin, H, W = x_nchw.shape
    _, Cout, K, _ = weight.shape
    OH = (H - 1) * stride + K
    OW = (W - 1) * stride + K

    assert K % stride == 0, "sub-pixel fast path assumes kernel size divisible by stride"
    T = K // stride                          # taps per output phase
    Qh = H + T - 1                           # per-phase output extent (Qh*stride == OH)
    Qw = W + T - 1
    Hp = H + 2 * (T - 1)
    Wp = W + 2 * (T - 1)
    CO2 = stride * stride * Cout             # all phases stacked on the matmul output dim
    TTC = T * T * Cin
    QQ = Qh * Qw

    # --- input: NCHW -> NHWC, pad spatially by (T-1).  No zero-dilated input is built. ---
    x_nhwc = jnp.transpose(x_nchw, (0, 2, 3, 1)).astype(jnp.float32)
    x_pad = jnp.pad(x_nhwc, ((0, 0), (T - 1, T - 1), (T - 1, T - 1), (0, 0)))

    # --- weight: pack into (T*T*Cin, stride^2*Cout), phase-flipped per sub-pixel tap ---
    # wmat[(a*T + c)*Cin + ci, (rh*stride + rw)*Cout + co]
    #   = weight[ci, co, (T-1-a)*stride + rh, (T-1-c)*stride + rw]
    w6 = weight.astype(jnp.float32).reshape(Cin, Cout, T, stride, T, stride)
    w6 = w6[:, :, ::-1, :, ::-1, :]
    wmat = jnp.transpose(w6, (2, 4, 0, 3, 5, 1)).reshape(TTC, CO2)

    cparams = pltpu.CompilerParams(dimension_semantics=("parallel",))

    # ---- pass 1: sub-pixel conv (single fat matmul) + per-image BN partial sums ----
    # wmat is constant across the grid and tiny here (TTC*CO2*4 B); for large Cin mark it
    # pipeline_mode=pl.Buffered(1) to avoid a redundant second weight buffer.
    kern1 = partial(conv_stats_kernel, Qh=Qh, Qw=Qw, T=T, Cin=Cin)
    z, stats = pl.pallas_call(
        kern1,
        out_shape=(jax.ShapeDtypeStruct((N, QQ, CO2), jnp.bfloat16),
                   jax.ShapeDtypeStruct((N, 2, CO2), jnp.float32)),
        grid=(N,),
        in_specs=[pl.BlockSpec((1, Hp, Wp, Cin), lambda n: (n, 0, 0, 0)),
                  pl.BlockSpec((TTC, CO2), lambda n: (0, 0))],
        out_specs=(pl.BlockSpec((1, QQ, CO2), lambda n: (n, 0, 0)),
                   pl.BlockSpec((1, 2, CO2), lambda n: (n, 0, 0))),
        compiler_params=cparams,
    )(x_pad, wmat)

    # ---- BN finalize (O(Cout) scalars, wrapper).  Global stats over all N*OH*OW rows. ----
    # The ConvTranspose2d bias adds a per-channel constant before training-mode BatchNorm
    # and therefore cancels exactly out of the normalized output; variance is unaffected.
    cnt = float(N * OH * OW)
    col_sum = jnp.sum(stats[:, 0, :], axis=0).reshape(stride * stride, Cout).sum(0)
    col_sqs = jnp.sum(stats[:, 1, :], axis=0).reshape(stride * stride, Cout).sum(0)
    mean_z = col_sum / cnt
    # E[z^2] - E[z]^2 in f32; clamp against cancellation.  For extreme per-channel means a
    # centered two-pass variance would be preferable.
    var = jnp.maximum(col_sqs / cnt - mean_z * mean_z, 0.0)
    scale = gamma.astype(jnp.float32) * jax.lax.rsqrt(var + eps)
    shift = beta.astype(jnp.float32) - mean_z * scale        # bias folded away (cancels)
    scale_row = jnp.tile(scale, stride * stride).reshape(1, CO2)
    shift_row = jnp.tile(shift, stride * stride).reshape(1, CO2)

    # ---- pass 2: normalize + ReLU on the batch-flattened rows with large row tiles ----
    total = N * QQ
    z2 = z.reshape(total, CO2)                               # metadata-only reshape
    if total <= 32:
        rows = total
    else:
        # >= 2 blocks (keeps both v7x TensorCores busy), capped at 2048 rows per block,
        # multiple of 16 so non-full bf16 blocks satisfy sublane packing.
        rows = min(2048, _round_up(pl.cdiv(total, 2), 16))
    ypad = pl.pallas_call(
        bn_relu_kernel,
        out_shape=jax.ShapeDtypeStruct((total, CO2), jnp.float32),
        grid=(pl.cdiv(total, rows),),
        in_specs=[pl.BlockSpec((rows, CO2), lambda r: (r, 0)),
                  pl.BlockSpec((1, CO2), lambda r: (0, 0)),
                  pl.BlockSpec((1, CO2), lambda r: (0, 0))],
        out_specs=pl.BlockSpec((rows, CO2), lambda r: (r, 0)),
        compiler_params=cparams,
    )(z2, scale_row, shift_row)

    # ---- pixel-shuffle the stride^2 phases back into NCHW (N, Cout, OH, OW) ----
    y = ypad.reshape(N, Qh, Qw, stride, stride, Cout)
    out = jnp.transpose(y, (0, 5, 1, 3, 2, 4)).reshape(N, Cout, OH, OW)
    return out


def reference(x, weight, bias, gamma, beta, stride, eps=1e-5):
    """Pure-JAX f32 reference following torch semantics exactly (NCHW)."""
    N, Cin, H, W = x.shape
    _, Cout, K, _ = weight.shape
    OH = (H - 1) * stride + K
    OW = (W - 1) * stride + K
    xc = x.astype(jnp.float32)
    wc = weight.astype(jnp.float32)
    y = jnp.zeros((N, Cout, OH, OW), jnp.float32)
    for kh in range(K):
        for kw in range(K):
            contrib = jnp.einsum('nchw,cd->ndhw', xc, wc[:, :, kh, kw],
                                 preferred_element_type=jnp.float32)
            y = y.at[:, :, kh:kh + (H - 1) * stride + 1:stride,
                           kw:kw + (W - 1) * stride + 1:stride].add(contrib)
    y = y + bias[None, :, None, None]
    mean = y.mean(axis=(0, 2, 3), keepdims=True)
    var = ((y - mean) ** 2).mean(axis=(0, 2, 3), keepdims=True)
    y = (y - mean) * jax.lax.rsqrt(var + eps) * gamma[None, :, None, None] \
        + beta[None, :, None, None]
    return jnp.maximum(y, 0.0)


if __name__ == "__main__":
    # GeneratorBlock(in_dim=4, out_dim=8, kernel=4, stride=2) on a (2, 4, 16, 16) input
    N, Cin, Cout, H, W, K, stride = 2, 4, 8, 16, 16, 4, 2

    key = jax.random.PRNGKey(0)
    kx, kw, kb, kg, kbt = jax.random.split(key, 5)
    x = jax.random.normal(kx, (N, Cin, H, W), jnp.float32)
    weight = 0.1 * jax.random.normal(kw, (Cin, Cout, K, K), jnp.float32)  # IOHW (torch)
    bias = 0.1 * jax.random.normal(kb, (Cout,), jnp.float32)
    gamma = 1.0 + 0.1 * jax.random.normal(kg, (Cout,), jnp.float32)       # BN weight
    beta = 0.1 * jax.random.normal(kbt, (Cout,), jnp.float32)             # BN bias

    out = generator_block(x, weight, bias, gamma, beta, stride)
    out = jax.block_until_ready(out)

    OH = (H - 1) * stride + K
    OW = (W - 1) * stride + K
    assert out.shape == (N, Cout, OH, OW), out.shape

    # f32 matmul + f32 statistics; the only rounding vs the f32 reference is the bf16
    # storage of the intermediate conv output z between the two passes.
    ref = reference(x, weight, bias, gamma, beta, stride)
    err = float(jnp.max(jnp.abs(out - ref)))
    assert err < 5e-2, err
    assert bool(jnp.all(out >= 0.0))

    print("KERNEL_OK")
</pallas_src>

<mosaic_0001>
module attributes {stable_mosaic.version = 11 : i64} {
  func.func @conv_stats_kernel(%arg0: i32, %arg1: memref<1x18x18x4xf32, #tpu.memory_space<vmem>>, %arg2: memref<16x32xf32, #tpu.memory_space<vmem>>, %arg3: memref<1x289x32xbf16, #tpu.memory_space<vmem>>, %arg4: memref<1x2x32xf32, #tpu.memory_space<vmem>>) attributes {dimension_semantics = [#tpu.dimension_semantics<parallel>], iteration_bounds = array<i64: 2>, scalar_prefetch = 0 : i64, scratch_operands = 0 : i64, tpu.core_type = #tpu.core_type<tc>, window_params = [{transform_indices = @transform_0, window_bounds = array<i64: 1, 18, 18, 4>}, {pipeline_mode = #tpu.pipeline_mode<synchronous>, transform_indices = @transform_1, window_bounds = array<i64: 16, 32>}, {transform_indices = @transform_2, window_bounds = array<i64: 1, 289, 32>}, {transform_indices = @transform_3, window_bounds = array<i64: 1, 2, 32>}]} {
    %c0 = arith.constant 0 : index
    %c0_0 = arith.constant 0 : index
    %c0_1 = arith.constant 0 : index
    %c0_2 = arith.constant 0 : index
    %0 = vector.load %arg1[%c0, %c0_0, %c0_1, %c0_2] : memref<1x18x18x4xf32, #tpu.memory_space<vmem>>, vector<1x18x18x4xf32>
    %1 = vector.shape_cast %0 : vector<1x18x18x4xf32> to vector<18x18x4xf32>
    %2 = vector.extract_strided_slice %1 {offsets = [0, 0, 0], sizes = [17, 17, 4], strides = [1, 1, 1]} : vector<18x18x4xf32> to vector<17x17x4xf32>
    %3 = vector.extract_strided_slice %1 {offsets = [0, 1, 0], sizes = [17, 17, 4], strides = [1, 1, 1]} : vector<18x18x4xf32> to vector<17x17x4xf32>
    %4 = vector.extract_strided_slice %1 {offsets = [1, 0, 0], sizes = [17, 17, 4], strides = [1, 1, 1]} : vector<18x18x4xf32> to vector<17x17x4xf32>
    %5 = vector.extract_strided_slice %1 {offsets = [1, 1, 0], sizes = [17, 17, 4], strides = [1, 1, 1]} : vector<18x18x4xf32> to vector<17x17x4xf32>
    %6 = tpu.concatenate %2, %3, %4, %5 in 2 : vector<17x17x4xf32>, vector<17x17x4xf32>, vector<17x17x4xf32>, vector<17x17x4xf32> -> vector<17x17x16xf32>
    %7 = vector.shape_cast %6 : vector<17x17x16xf32> to vector<289x16xf32>
    %c0_3 = arith.constant 0 : index
    %c0_4 = arith.constant 0 : index
    %8 = vector.load %arg2[%c0_3, %c0_4] : memref<16x32xf32, #tpu.memory_space<vmem>>, vector<16x32xf32>
    %cst = arith.constant dense<0.000000e+00> : vector<289x32xf32>
    %9 = tpu.matmul %7, %8, %cst {dimension_numbers = #tpu.dot_dimension_numbers<[1], [0], [0], [1], [0, 0, 1, 1], [], []>} : vector<289x16xf32>, vector<16x32xf32>, vector<289x32xf32> -> vector<289x32xf32>
    %cst_5 = arith.constant dense<0.000000e+00> : vector<32xf32>
    %10 = vector.multi_reduction <add>, %9, %cst_5 [0] : vector<289x32xf32> to vector<32xf32>
    %11 = vector.shape_cast %10 : vector<32xf32> to vector<1x32xf32>
    %12 = arith.mulf %9, %9 : vector<289x32xf32>
    %cst_6 = arith.constant dense<0.000000e+00> : vector<32xf32>
    %13 = vector.multi_reduction <add>, %12, %cst_6 [0] : vector<289x32xf32> to vector<32xf32>
    %14 = vector.shape_cast %13 : vector<32xf32> to vector<1x32xf32>
    %15 = tpu.concatenate %11, %14 in 0 : vector<1x32xf32>, vector<1x32xf32> -> vector<2x32xf32>
    %c0_7 = arith.constant 0 : index
    %c0_8 = arith.constant 0 : index
    %c0_9 = arith.constant 0 : index
    %16 = vector.load %arg4[%c0_7, %c0_8, %c0_9] : memref<1x2x32xf32, #tpu.memory_space<vmem>>, vector<1x2x32xf32>
    %17 = vector.shape_cast %16 : vector<1x2x32xf32> to vector<2x32xf32>
    %18 = vector.shape_cast %15 : vector<2x32xf32> to vector<1x2x32xf32>
    tpu.vector_store %arg4[%c0_7, %c0_8, %c0_9], %18 {strides = array<i32>} : memref<1x2x32xf32, #tpu.memory_space<vmem>>, vector<1x2x32xf32>,
    %19 = arith.truncf %9 : vector<289x32xf32> to vector<289x32xbf16>
    %c0_10 = arith.constant 0 : index
    %c0_11 = arith.constant 0 : index
    %c0_12 = arith.constant 0 : index
    %20 = vector.load %arg3[%c0_10, %c0_11, %c0_12] : memref<1x289x32xbf16, #tpu.memory_space<vmem>>, vector<1x289x32xbf16>
    %21 = vector.shape_cast %20 : vector<1x289x32xbf16> to vector<289x32xbf16>
    %22 = vector.shape_cast %19 : vector<289x32xbf16> to vector<1x289x32xbf16>
    tpu.vector_store %arg3[%c0_10, %c0_11, %c0_12], %22 {strides = array<i32>} : memref<1x289x32xbf16, #tpu.memory_space<vmem>>, vector<1x289x32xbf16>,
    return
  }
  func.func @transform_0(%arg0: i32) -> (i32, i32, i32, i32) {
    %c0_i32 = arith.constant 0 : i32
    %c0_i32_0 = arith.constant 0 : i32
    %c0_i32_1 = arith.constant 0 : i32
    %c0_i32_2 = arith.constant 0 : i32
    return %arg0, %c0_i32, %c0_i32_0, %c0_i32_1 : i32, i32, i32, i32
  }
  func.func @transform_1(%arg0: i32) -> (i32, i32) {
    %c0_i32 = arith.constant 0 : i32
    %c0_i32_0 = arith.constant 0 : i32
    %c0_i32_1 = arith.constant 0 : i32
    return %c0_i32, %c0_i32_0 : i32, i32
  }
  func.func @transform_2(%arg0: i32) -> (i32, i32, i32) {
    %c0_i32 = arith.constant 0 : i32
    %c0_i32_0 = arith.constant 0 : i32
    %c0_i32_1 = arith.constant 0 : i32
    return %arg0, %c0_i32, %c0_i32_0 : i32, i32, i32
  }
  func.func @transform_3(%arg0: i32) -> (i32, i32, i32) {
    %c0_i32 = arith.constant 0 : i32
    %c0_i32_0 = arith.constant 0 : i32
    %c0_i32_1 = arith.constant 0 : i32
    return %arg0, %c0_i32, %c0_i32_0 : i32, i32, i32
  }
}

</mosaic_0001>

<llo_original>
// kernel: tpu_custom_call.1
$region0: #{tpu_custom_call.1}
  #allocation0 [shape = 'u32[]', space=smem, size = 0x4, offset = 0x4, fixed_abs, tag = 'smem constant byte address 0x4 - core index']
  #allocation1 [shape = 'u32[72,128]{1,0:T(1,128)}', space=vmem, size = 0x9000, scoped, tag = 'internal scratch']
  %s0 = inlined_call_operand.vmem [shape: f32[2,18,18,4], index: 0, kind: input, shape index: {}]
  %s1 = inlined_call_operand.vmem [shape: f32[16,32], index: 1, kind: input, shape index: {}]
  %s2 = inlined_call_operand.vmem [shape: bf16[2,289,32], index: 2, kind: output, shape index: {0}]
  %s3 = inlined_call_operand.hbm [shape: f32[2,2,32], index: 3, kind: output, shape index: {1}]
  %4 = xla_tuple %s2, %s3
  %s5 = sld [smem:[#allocation0]]
  $region49: #{tpu_custom_call.1} parent=0
    _
  %s7 = ssub.s32 1, %s5
  %s8 = scalar_select 0, %s7, %s5
  $region1: #{tpu_custom_call.1} parent=0
    #allocation2 [shape = 'u8[2048]{0}', space=vmem, size = 0x800, scoped, tag = 'output window, operand 1']
    #allocation3 [shape = 's32[2]{0}', space=sflag, size = 0x8, scoped, tag = 'scoped memory for tpu_custom_call.1']
    %9 = vsyncpa [#allocation3], 0
    %s10 = scalar_lea.sflag [#allocation3], 1
    %11 = vsyncpa %s10, 0
    loop: start=0, step=1, limit=4
    $region2: #{tpu_custom_call.1} parent=1 // loop_pre_header
      _
    $region3: #{tpu_custom_call.1} parent=1 // loop_header
      %s13 = sphi 0, %s17
      %p14 = scmp.ge.s32.totalorder %s13, 4
      %s23 = sphi 0, %s25
      %s26 = sphi 0, %s23
      %s27 = sphi 0, %s26
      %s43 = sphi 0, %s27
      %s47 = sphi 0, %s47
      %s49 = sphi 0, %s47
      %s50 = sphi 0, %s49
      %s64 = sphi 0, %s50
      %s70 = sphi 0, %s72
      %s73 = sphi 0, %s70
      %s74 = sphi 0, %s73
      %s90 = sphi 0, %s74
      %s96 = sphi 0, %s98
      %s99 = sphi 0, %s96
      %s100 = sphi 0, %s99
      %s116 = sphi 0, %s100
    $region4: #{tpu_custom_call.1} parent=1 // loop_header_branch
      %16 = sbr.rel (%p14) target = $region8
    $region5: #{tpu_custom_call.1} parent=1 // loop_body
      %s18 = ssub.s32 %s13, 1
      %s19 = ssub.s32 %s13, 2
      %s20 = sadd.s32 %s13, 1
      %s21 = ssub.s32 %s13, %s20
      %p22 = scmp.eq.s32.totalorder %s21, 0
      %s24 = sadd.s32 %s23, 1
      %s25 = scalar_select %p22, %s23, %s24
      %p28 = pneg %p22
      %p29 = scmp.eq.s32.totalorder %s13, 1
      %p30 = por %p28, %p29
      %p31 = scmp.ne.s32.totalorder %s23, %s26
      %p32 = scmp.eq.s32.totalorder %s13, 0
      %p33 = por %p31, %p32
      %p34 = scmp.ne.s32.totalorder %s23, %s26
      %p35 = scmp.eq.s32.totalorder %s18, 1
      %p36 = por %p34, %p35
      %p37 = scmp.ne.s32.totalorder %s26, %s27
      %p38 = scmp.eq.s32.totalorder %s18, 0
      %p39 = por %p37, %p38
      %p40 = scmp.ne.s32.totalorder %s26, %s27
      %p41 = scmp.eq.s32.totalorder %s19, 1
      %p42 = por %p40, %p41
      %p44 = scmp.ne.s32.totalorder %s27, %s43
      %p45 = scmp.eq.s32.totalorder %s19, 0
      %p46 = por %p44, %p45
      %s48 = sadd.s32 %s47, 1
      %p51 = scmp.eq.s32.totalorder %s13, 1
      %p52 = scmp.ne.s32.totalorder %s47, %s49
      %p53 = scmp.eq.s32.totalorder %s13, 0
      %p54 = por %p52, %p53
      %p55 = scmp.ne.s32.totalorder %s47, %s49
      %p56 = scmp.eq.s32.totalorder %s18, 1
      %p57 = por %p55, %p56
      %p58 = scmp.ne.s32.totalorder %s49, %s50
      %p59 = scmp.eq.s32.totalorder %s18, 0
      %p60 = por %p58, %p59
      %p61 = scmp.ne.s32.totalorder %s49, %s50
      %p62 = scmp.eq.s32.totalorder %s19, 1
      %p63 = por %p61, %p62
      %p65 = scmp.ne.s32.totalorder %s50, %s64
      %p66 = scmp.eq.s32.totalorder %s19, 0
      %p67 = por %p65, %p66
      %s68 = ssub.s32 %s13, %s20
      %p69 = scmp.eq.s32.totalorder %s68, 0
      %s71 = sadd.s32 %s70, 1
      %s72 = scalar_select %p69, %s70, %s71
      %p75 = pneg %p69
      %p76 = scmp.eq.s32.totalorder %s13, 1
      %p77 = por %p75, %p76
      %p78 = scmp.ne.s32.totalorder %s70, %s73
      %p79 = scmp.eq.s32.totalorder %s13, 0
      %p80 = por %p78, %p79
      %p81 = scmp.ne.s32.totalorder %s70, %s73
      %p82 = scmp.eq.s32.totalorder %s18, 1
      %p83 = por %p81, %p82
      %p84 = scmp.ne.s32.totalorder %s73, %s74
      %p85 = scmp.eq.s32.totalorder %s18, 0
      %p86 = por %p84, %p85
      %p87 = scmp.ne.s32.totalorder %s73, %s74
      %p88 = scmp.eq.s32.totalorder %s19, 1
      %p89 = por %p87, %p88
      %p91 = scmp.ne.s32.totalorder %s74, %s90
      %p92 = scmp.eq.s32.totalorder %s19, 0
      %p93 = por %p91, %p92
      %s94 = ssub.s32 %s13, %s20
      %p95 = scmp.eq.s32.totalorder %s94, 0
      %s97 = sadd.s32 %s96, 1
      %s98 = scalar_select %p95, %s96, %s97
      %p101 = pneg %p95
      %p102 = scmp.eq.s32.totalorder %s13, 1
      %p103 = por %p101, %p102
      %p104 = scmp.ne.s32.totalorder %s96, %s99
      %p105 = scmp.eq.s32.totalorder %s13, 0
      %p106 = por %p104, %p105
      %p107 = scmp.ne.s32.totalorder %s96, %s99
      %p108 = scmp.eq.s32.totalorder %s18, 1
      %p109 = por %p107, %p108
      %p110 = scmp.ne.s32.totalorder %s99, %s100
      %p111 = scmp.eq.s32.totalorder %s18, 0
      %p112 = por %p110, %p111
      %p113 = scmp.ne.s32.totalorder %s99, %s100
      %p114 = scmp.eq.s32.totalorder %s19, 1
      %p115 = por %p113, %p114
      %p117 = scmp.ne.s32.totalorder %s100, %s116
      %p118 = scmp.eq.s32.totalorder %s19, 0
      %p119 = por %p117, %p118
      %p120 = scmp.le.s32.totalorder 1, %s13
      %p121 = scmp.lt.s32.totalorder %s13, 3
      %p122 = pnand %p120, %p121
      %p123 = pneg %p122
      // Predicated region
      $region9: #{tpu_custom_call.1} parent=5 // pred_check
        _
      $region10: #{tpu_custom_call.1} parent=5 // pred_check_branch
        %125 = sbr.rel (%p122) target = $region12
      $region11: #{tpu_custom_call.1} parent=5 // pred_region
        %s126 = ssub.s32 %s13, 1
        // Predicated region
        $region13: #{tpu_custom_call.1} parent=11 // pred_check
          %p127 = pneg %p60
        $region14: #{tpu_custom_call.1} parent=11 // pred_check_branch
          %129 = sbr.rel (%p127) target = $region16
        $region15: #{tpu_custom_call.1} parent=11 // pred_region
          _
        $region16: #{tpu_custom_call.1} parent=11 // pred_fallthru
          _
      $region12: #{tpu_custom_call.1} parent=5 // pred_fallthru
        _
      %p130 = scmp.lt.s32.totalorder %s13, 2
      // Predicated region
      $region17: #{tpu_custom_call.1} parent=5 // pred_check
        %p131 = pneg %p130
      $region18: #{tpu_custom_call.1} parent=5 // pred_check_branch
        %133 = sbr.rel (%p131) target = $region20
      $region19: #{tpu_custom_call.1} parent=5 // pred_region
        // Predicated region
        $region21: #{tpu_custom_call.1} parent=19 // pred_check
          %p134 = pneg %p33
        $region22: #{tpu_custom_call.1} parent=19 // pred_check_branch
          %136 = sbr.rel (%p134) target = $region24
        $region23: #{tpu_custom_call.1} parent=19 // pred_region
          %p137 = scmp.lt.s32.totalorder %s13, 1
          %s138 = scalar_select %p137, %s13, 1
          %s139 = smul.addr %s138, 54
          %s140 = smul.addr %s139, 8
          %s141 = scalar_lea.vmem %s0, %s140
        $region24: #{tpu_custom_call.1} parent=19 // pred_fallthru
          _
      $region20: #{tpu_custom_call.1} parent=5 // pred_fallthru
        _
      %p142 = scmp.le.s32.totalorder 1, %s13
      %p143 = scmp.lt.s32.totalorder %s13, 3
      %p144 = pnand %p142, %p143
      %p145 = pneg %p144
      // Predicated region
      $region25: #{tpu_custom_call.1} parent=5 // pred_check
        _
      $region26: #{tpu_custom_call.1} parent=5 // pred_check_branch
        %147 = sbr.rel (%p144) target = $region28
      $region27: #{tpu_custom_call.1} parent=5 // pred_region
        %s148 = ssub.s32 %s13, 1
        %p149 = scmp.lt.s32.totalorder %s18, 1
        %s150 = scalar_select %p149, %s18, 1
        %s151 = smul.addr %s150, 54
        %s152 = smul.addr %s151, 8
        %s153 = scalar_lea.vmem %s0, %s152
        %p154 = pneg %p39
        %p155 = pneg %p36
        %p156 = pneg %p60
        %p157 = pneg %p57
        %p158 = pneg %p86
        %p159 = pneg %p83
        %p160 = scmp.lt.s32.totalorder %s18, 1
        %s161 = scalar_select %p160, %s18, 1
        %s162 = smul.addr %s161, 37
        %s163 = smul.addr %s162, 4
        %s164 = scalar_lea.vmem %s2, %s163
        %p165 = pneg %p112
        %p166 = pneg %p109
        %s167 = sand.u32 %s99, 1
        %s168 = scalar_lea.sflag [#allocation3], %s167
        %s169 = sand.u32 %s99, 1
        %s170 = smul.addr %s169, 2
        %s171 = scalar_lea.vmem [#allocation2], %s170
        %p172 = scmp.lt.s32.totalorder %s18, 1
        %s173 = scalar_select %p172, %s18, 1
        %s174 = smul.addr %s173, 54
        %s175 = smul.addr %s174, 8
        %s176 = scalar_lea.vmem %s0, %s175
        %p177 = scmp.lt.s32.totalorder %s18, 1
        %s178 = scalar_select %p177, %s18, 1
        %s179 = smul.addr %s178, 37
        %s180 = smul.addr %s179, 4
        %s181 = scalar_lea.vmem %s2, %s180
        %v182 = vld [vmem:[%s176] sm:$0xff]
        %v183 = vld [vmem:[%s176 + $0x8] sm:$0xff]
        %v184 = vld [vmem:[%s176 + $0x10] sm:$0x3]
        %v185 = vld [vmem:[%s176 + $0x18] sm:$0xff]
        %v186 = vld [vmem:[%s176 + $0x20] sm:$0xff]
        %v187 = vld [vmem:[%s176 + $0x28] sm:$0x3]
        %v188 = vld [vmem:[%s176 + $0x30] sm:$0xff]
        %v189 = vld [vmem:[%s176 + $0x38] sm:$0xff]
        %v190 = vld [vmem:[%s176 + $0x40] sm:$0x3]
        %v191 = vld [vmem:[%s176 + $0x48] sm:$0xff]
        %v192 = vld [vmem:[%s176 + $0x50] sm:$0xff]
        %v193 = vld [vmem:[%s176 + $0x58] sm:$0x3]
        %v194 = vld [vmem:[%s176 + $0x60] sm:$0xff]
        %v195 = vld [vmem:[%s176 + $0x68] sm:$0xff]
        %v196 = vld [vmem:[%s176 + $0x70] sm:$0x3]
        %v197 = vld [vmem:[%s176 + $0x78] sm:$0xff]
        %v198 = vld [vmem:[%s176 + $0x80] sm:$0xff]
        %v199 = vld [vmem:[%s176 + $0x88] sm:$0x3]
        %v200 = vld [vmem:[%s176 + $0x90] sm:$0xff]
        %v201 = vld [vmem:[%s176 + $0x98] sm:$0xff]
        %v202 = vld [vmem:[%s176 + $0xa0] sm:$0x3]
        %v203 = vld [vmem:[%s176 + $0xa8] sm:$0xff]
        %v204 = vld [vmem:[%s176 + $0xb0] sm:$0xff]
        %v205 = vld [vmem:[%s176 + $0xb8] sm:$0x3]
        %v206 = vld [vmem:[%s176 + $0xc0] sm:$0xff]
        %v207 = vld [vmem:[%s176 + $0xc8] sm:$0xff]
        %v208 = vld [vmem:[%s176 + $0xd0] sm:$0x3]
        %v209 = vld [vmem:[%s176 + $0xd8] sm:$0xff]
        %v210 = vld [vmem:[%s176 + $0xe0] sm:$0xff]
        %v211 = vld [vmem:[%s176 + $0xe8] sm:$0x3]
        %v212 = vld [vmem:[%s176 + $0xf0] sm:$0xff]
        %v213 = vld [vmem:[%s176 + $0xf8] sm:$0xff]
        %v214 = vld [vmem:[%s176 + $0x100] sm:$0x3]
        %v215 = vld [vmem:[%s176 + $0x108] sm:$0xff]
        %v216 = vld [vmem:[%s176 + $0x110] sm:$0xff]
        %v217 = vld [vmem:[%s176 + $0x118] sm:$0x3]
        %v218 = vld [vmem:[%s176 + $0x120] sm:$0xff]
        %v219 = vld [vmem:[%s176 + $0x128] sm:$0xff]
        %v220 = vld [vmem:[%s176 + $0x130] sm:$0x3]
        %v221 = vld [vmem:[%s176 + $0x138] sm:$0xff]
        %v222 = vld [vmem:[%s176 + $0x140] sm:$0xff]
        %v223 = vld [vmem:[%s176 + $0x148] sm:$0x3]
        %v224 = vld [vmem:[%s176 + $0x150] sm:$0xff]
        %v225 = vld [vmem:[%s176 + $0x158] sm:$0xff]
        %v226 = vld [vmem:[%s176 + $0x160] sm:$0x3]
        %v227 = vld [vmem:[%s176 + $0x168] sm:$0xff]
        %v228 = vld [vmem:[%s176 + $0x170] sm:$0xff]
        %v229 = vld [vmem:[%s176 + $0x178] sm:$0x3]
        %v230 = vld [vmem:[%s176 + $0x180] sm:$0xff]
        %v231 = vld [vmem:[%s176 + $0x188] sm:$0xff]
        %v232 = vld [vmem:[%s176 + $0x190] sm:$0x3]
        %v233 = vld [vmem:[%s176 + $0x198] sm:$0xff]
        %v234 = vld [vmem:[%s176 + $0x1a0] sm:$0xff]
        %v235 = vld [vmem:[%s176 + $0x1a8] sm:$0x3]
        %vm287 = vcmask 1046528
        %v288 = vrot.slane %v182, 1
        %v289 = vrot.slane %v183, 1
        %v290 = vsel %vm287, %v288, %v289
        %v291 = vrot.slane %v184, 1
        %v292 = vsel %vm287, %v289, %v291
        %v293 = vrot.slane %v185, 1
        %v294 = vrot.slane %v186, 1
        %v295 = vsel %vm287, %v293, %v294
        %v296 = vrot.slane %v187, 1
        %v297 = vsel %vm287, %v294, %v296
        %v298 = vrot.slane %v188, 1
        %v299 = vrot.slane %v189, 1
        %v300 = vsel %vm287, %v298, %v299
        %v301 = vrot.slane %v190, 1
        %v302 = vsel %vm287, %v299, %v301
        %v303 = vrot.slane %v191, 1
        %v304 = vrot.slane %v192, 1
        %v305 = vsel %vm287, %v303, %v304
        %v306 = vrot.slane %v193, 1
        %v307 = vsel %vm287, %v304, %v306
        %v308 = vrot.slane %v194, 1
        %v309 = vrot.slane %v195, 1
        %v310 = vsel %vm287, %v308, %v309
        %v311 = vrot.slane %v196, 1
        %v312 = vsel %vm287, %v309, %v311
        %v313 = vrot.slane %v197, 1
        %v314 = vrot.slane %v198, 1
        %v315 = vsel %vm287, %v313, %v314
        %v316 = vrot.slane %v199, 1
        %v317 = vsel %vm287, %v314, %v316
        %v318 = vrot.slane %v200, 1
        %v319 = vrot.slane %v201, 1
        %v320 = vsel %vm287, %v318, %v319
        %v321 = vrot.slane %v202, 1
        %v322 = vsel %vm287, %v319, %v321
        %v323 = vrot.slane %v203, 1
        %v324 = vrot.slane %v204, 1
        %v325 = vsel %vm287, %v323, %v324
        %v326 = vrot.slane %v205, 1
        %v327 = vsel %vm287, %v324, %v326
        %v328 = vrot.slane %v206, 1
        %v329 = vrot.slane %v207, 1
        %v330 = vsel %vm287, %v328, %v329
        %v331 = vrot.slane %v208, 1
        %v332 = vsel %vm287, %v329, %v331
        %v333 = vrot.slane %v209, 1
        %v334 = vrot.slane %v210, 1
        %v335 = vsel %vm287, %v333, %v334
        %v336 = vrot.slane %v211, 1
        %v337 = vsel %vm287, %v334, %v336
        %v338 = vrot.slane %v212, 1
        %v339 = vrot.slane %v213, 1
        %v340 = vsel %vm287, %v338, %v339
        %v341 = vrot.slane %v214, 1
        %v342 = vsel %vm287, %v339, %v341
        %v343 = vrot.slane %v215, 1
        %v344 = vrot.slane %v216, 1
        %v345 = vsel %vm287, %v343, %v344
        %v346 = vrot.slane %v217, 1
        %v347 = vsel %vm287, %v344, %v346
        %v348 = vrot.slane %v218, 1
        %v349 = vrot.slane %v219, 1
        %v350 = vsel %vm287, %v348, %v349
        %v351 = vrot.slane %v220, 1
        %v352 = vsel %vm287, %v349, %v351
        %v353 = vrot.slane %v221, 1
        %v354 = vrot.slane %v222, 1
        %v355 = vsel %vm287, %v353, %v354
        %v356 = vrot.slane %v223, 1
        %v357 = vsel %vm287, %v354, %v356
        %v358 = vrot.slane %v224, 1
        %v359 = vrot.slane %v225, 1
        %v360 = vsel %vm287, %v358, %v359
        %v361 = vrot.slane %v226, 1
        %v362 = vsel %vm287, %v359, %v361
        %v363 = vrot.slane %v227, 1
        %v364 = vrot.slane %v228, 1
        %v365 = vsel %vm287, %v363, %v364
        %v366 = vrot.slane %v229, 1
        %v367 = vsel %vm287, %v364, %v366
        %v368 = vrot.slane %v230, 1
        %v369 = vrot.slane %v231, 1
        %v370 = vsel %vm287, %v368, %v369
        %v371 = vrot.slane %v232, 1
        %v372 = vsel %vm287, %v369, %v371
        %373 = vrot.lane.b32.xlu0 %v290, 4
        %v374 = vpop.permute.xlu0 %373
        %375 = vrot.lane.b32.xlu0 %v292, 4
        %v376 = vpop.permute.xlu0 %375
        %377 = vrot.lane.b32.xlu0 %v291, 4
        %v378 = vpop.permute.xlu0 %377
        %379 = vrot.lane.b32.xlu0 %v295, 4
        %v380 = vpop.permute.xlu0 %379
        %381 = vrot.lane.b32.xlu0 %v297, 4
        %v382 = vpop.permute.xlu0 %381
        %383 = vrot.lane.b32.xlu0 %v296, 4
        %v384 = vpop.permute.xlu0 %383
        %385 = vrot.lane.b32.xlu0 %v300, 4
        %v386 = vpop.permute.xlu0 %385
        %387 = vrot.lane.b32.xlu0 %v302, 4
        %v388 = vpop.permute.xlu0 %387
        %389 = vrot.lane.b32.xlu0 %v301, 4
        %v390 = vpop.permute.xlu0 %389
        %391 = vrot.lane.b32.xlu0 %v305, 4
        %v392 = vpop.permute.xlu0 %391
        %393 = vrot.lane.b32.xlu0 %v307, 4
        %v394 = vpop.permute.xlu0 %393
        %395 = vrot.lane.b32.xlu0 %v306, 4
        %v396 = vpop.permute.xlu0 %395
        %397 = vrot.lane.b32.xlu0 %v310, 4
        %v398 = vpop.permute.xlu0 %397
        %399 = vrot.lane.b32.xlu0 %v312, 4
        %v400 = vpop.permute.xlu0 %399
        %401 = vrot.lane.b32.xlu0 %v311, 4
        %v402 = vpop.permute.xlu0 %401
        %403 = vrot.lane.b32.xlu0 %v315, 4
        %v404 = vpop.permute.xlu0 %403
        %405 = vrot.lane.b32.xlu0 %v317, 4
        %v406 = vpop.permute.xlu0 %405
        %407 = vrot.lane.b32.xlu0 %v316, 4
        %v408 = vpop.permute.xlu0 %407
        %409 = vrot.lane.b32.xlu0 %v320, 4
        %v410 = vpop.permute.xlu0 %409
        %411 = vrot.lane.b32.xlu0 %v322, 4
        %v412 = vpop.permute.xlu0 %411
        %413 = vrot.lane.b32.xlu0 %v321, 4
        %v414 = vpop.permute.xlu0 %413
        %415 = vrot.lane.b32.xlu0 %v325, 4
        %v416 = vpop.permute.xlu0 %415
        %417 = vrot.lane.b32.xlu0 %v327, 4
        %v418 = vpop.permute.xlu0 %417
        %419 = vrot.lane.b32.xlu0 %v326, 4
        %v420 = vpop.permute.xlu0 %419
        %421 = vrot.lane.b32.xlu0 %v330, 4
        %v422 = vpop.permute.xlu0 %421
        %423 = vrot.lane.b32.xlu0 %v332, 4
        %v424 = vpop.permute.xlu0 %423
        %425 = vrot.lane.b32.xlu0 %v331, 4
        %v426 = vpop.permute.xlu0 %425
        %427 = vrot.lane.b32.xlu0 %v335, 4
        %v428 = vpop.permute.xlu0 %427
        %429 = vrot.lane.b32.xlu0 %v337, 4
        %v430 = vpop.permute.xlu0 %429
        %431 = vrot.lane.b32.xlu0 %v336, 4
        %v432 = vpop.permute.xlu0 %431
        %433 = vrot.lane.b32.xlu0 %v340, 4
        %v434 = vpop.permute.xlu0 %433
        %435 = vrot.lane.b32.xlu0 %v342, 4
        %v436 = vpop.permute.xlu0 %435
        %437 = vrot.lane.b32.xlu0 %v341, 4
        %v438 = vpop.permute.xlu0 %437
        %439 = vrot.lane.b32.xlu0 %v345, 4
        %v440 = vpop.permute.xlu0 %439
        %441 = vrot.lane.b32.xlu0 %v347, 4
        %v442 = vpop.permute.xlu0 %441
        %443 = vrot.lane.b32.xlu0 %v346, 4
        %v444 = vpop.permute.xlu0 %443
        %445 = vrot.lane.b32.xlu0 %v350, 4
        %v446 = vpop.permute.xlu0 %445
        %447 = vrot.lane.b32.xlu0 %v352, 4
        %v448 = vpop.permute.xlu0 %447
        %449 = vrot.lane.b32.xlu0 %v351, 4
        %v450 = vpop.permute.xlu0 %449
        %451 = vrot.lane.b32.xlu0 %v355, 4
        %v452 = vpop.permute.xlu0 %451
        %453 = vrot.lane.b32.xlu0 %v357, 4
        %v454 = vpop.permute.xlu0 %453
        %455 = vrot.lane.b32.xlu0 %v356, 4
        %v456 = vpop.permute.xlu0 %455
        %457 = vrot.lane.b32.xlu0 %v360, 4
        %v458 = vpop.permute.xlu0 %457
        %459 = vrot.lane.b32.xlu0 %v362, 4
        %v460 = vpop.permute.xlu0 %459
        %461 = vrot.lane.b32.xlu0 %v361, 4
        %v462 = vpop.permute.xlu0 %461
        %463 = vrot.lane.b32.xlu0 %v365, 4
        %v464 = vpop.permute.xlu0 %463
        %465 = vrot.lane.b32.xlu0 %v367, 4
        %v466 = vpop.permute.xlu0 %465
        %467 = vrot.lane.b32.xlu0 %v366, 4
        %v468 = vpop.permute.xlu0 %467
        %469 = vrot.lane.b32.xlu0 %v370, 4
        %v470 = vpop.permute.xlu0 %469
        %471 = vrot.lane.b32.xlu0 %v372, 4
        %v472 = vpop.permute.xlu0 %471
        %473 = vrot.lane.b32.xlu0 %v371, 4
        %v474 = vpop.permute.xlu0 %473
        %529 = vrot.lane.b32.xlu0 %v185, 8
        %v530 = vpop.permute.xlu0 %529
        %531 = vrot.lane.b32.xlu0 %v186, 8
        %v532 = vpop.permute.xlu0 %531
        %533 = vrot.lane.b32.xlu0 %v187, 8
        %v534 = vpop.permute.xlu0 %533
        %535 = vrot.lane.b32.xlu0 %v188, 8
        %v536 = vpop.permute.xlu0 %535
        %537 = vrot.lane.b32.xlu0 %v189, 8
        %v538 = vpop.permute.xlu0 %537
        %539 = vrot.lane.b32.xlu0 %v190, 8
        %v540 = vpop.permute.xlu0 %539
        %541 = vrot.lane.b32.xlu0 %v191, 8
        %v542 = vpop.permute.xlu0 %541
        %543 = vrot.lane.b32.xlu0 %v192, 8
        %v544 = vpop.permute.xlu0 %543
        %545 = vrot.lane.b32.xlu0 %v193, 8
        %v546 = vpop.permute.xlu0 %545
        %547 = vrot.lane.b32.xlu0 %v194, 8
        %v548 = vpop.permute.xlu0 %547
        %549 = vrot.lane.b32.xlu0 %v195, 8
        %v550 = vpop.permute.xlu0 %549
        %551 = vrot.lane.b32.xlu0 %v196, 8
        %v552 = vpop.permute.xlu0 %551
        %553 = vrot.lane.b32.xlu0 %v197, 8
        %v554 = vpop.permute.xlu0 %553
        %555 = vrot.lane.b32.xlu0 %v198, 8
        %v556 = vpop.permute.xlu0 %555
        %557 = vrot.lane.b32.xlu0 %v199, 8
        %v558 = vpop.permute.xlu0 %557
        %559 = vrot.lane.b32.xlu0 %v200, 8
        %v560 = vpop.permute.xlu0 %559
        %561 = vrot.lane.b32.xlu0 %v201, 8
        %v562 = vpop.permute.xlu0 %561
        %563 = vrot.lane.b32.xlu0 %v202, 8
        %v564 = vpop.permute.xlu0 %563
        %565 = vrot.lane.b32.xlu0 %v203, 8
        %v566 = vpop.permute.xlu0 %565
        %567 = vrot.lane.b32.xlu0 %v204, 8
        %v568 = vpop.permute.xlu0 %567
        %569 = vrot.lane.b32.xlu0 %v205, 8
        %v570 = vpop.permute.xlu0 %569
        %571 = vrot.lane.b32.xlu0 %v206, 8
        %v572 = vpop.permute.xlu0 %571
        %573 = vrot.lane.b32.xlu0 %v207, 8
        %v574 = vpop.permute.xlu0 %573
        %575 = vrot.lane.b32.xlu0 %v208, 8
        %v576 = vpop.permute.xlu0 %575
        %577 = vrot.lane.b32.xlu0 %v209, 8
        %v578 = vpop.permute.xlu0 %577
        %579 = vrot.lane.b32.xlu0 %v210, 8
        %v580 = vpop.permute.xlu0 %579
        %581 = vrot.lane.b32.xlu0 %v211, 8
        %v582 = vpop.permute.xlu0 %581
        %583 = vrot.lane.b32.xlu0 %v212, 8
        %v584 = vpop.permute.xlu0 %583
        %585 = vrot.lane.b32.xlu0 %v213, 8
        %v586 = vpop.permute.xlu0 %585
        %587 = vrot.lane.b32.xlu0 %v214, 8
        %v588 = vpop.permute.xlu0 %587
        %589 = vrot.lane.b32.xlu0 %v215, 8
        %v590 = vpop.permute.xlu0 %589
        %591 = vrot.lane.b32.xlu0 %v216, 8
        %v592 = vpop.permute.xlu0 %591
        %593 = vrot.lane.b32.xlu0 %v217, 8
        %v594 = vpop.permute.xlu0 %593
        %595 = vrot.lane.b32.xlu0 %v218, 8
        %v596 = vpop.permute.xlu0 %595
        %597 = vrot.lane.b32.xlu0 %v219, 8
        %v598 = vpop.permute.xlu0 %597
        %599 = vrot.lane.b32.xlu0 %v220, 8
        %v600 = vpop.permute.xlu0 %599
        %601 = vrot.lane.b32.xlu0 %v221, 8
        %v602 = vpop.permute.xlu0 %601
        %603 = vrot.lane.b32.xlu0 %v222, 8
        %v604 = vpop.permute.xlu0 %603
        %605 = vrot.lane.b32.xlu0 %v223, 8
        %v606 = vpop.permute.xlu0 %605
        %607 = vrot.lane.b32.xlu0 %v224, 8
        %v608 = vpop.permute.xlu0 %607
        %609 = vrot.lane.b32.xlu0 %v225, 8
        %v610 = vpop.permute.xlu0 %609
        %611 = vrot.lane.b32.xlu0 %v226, 8
        %v612 = vpop.permute.xlu0 %611
        %613 = vrot.lane.b32.xlu0 %v227, 8
        %v614 = vpop.permute.xlu0 %613
        %615 = vrot.lane.b32.xlu0 %v228, 8
        %v616 = vpop.permute.xlu0 %615
        %617 = vrot.lane.b32.xlu0 %v229, 8
        %v618 = vpop.permute.xlu0 %617
        %619 = vrot.lane.b32.xlu0 %v230, 8
        %v620 = vpop.permute.xlu0 %619
        %621 = vrot.lane.b32.xlu0 %v231, 8
        %v622 = vpop.permute.xlu0 %621
        %623 = vrot.lane.b32.xlu0 %v232, 8
        %v624 = vpop.permute.xlu0 %623
        %625 = vrot.lane.b32.xlu0 %v233, 8
        %v626 = vpop.permute.xlu0 %625
        %627 = vrot.lane.b32.xlu0 %v234, 8
        %v628 = vpop.permute.xlu0 %627
        %629 = vrot.lane.b32.xlu0 %v235, 8
        %v630 = vpop.permute.xlu0 %629
        %v682 = vrot.slane %v233, 1
        %v683 = vrot.slane %v234, 1
        %v684 = vsel %vm287, %v682, %v683
        %v685 = vrot.slane %v235, 1
        %v686 = vsel %vm287, %v683, %v685
        %687 = vrot.lane.b32.xlu0 %v295, 12
        %v688 = vpop.permute.xlu0 %687
        %689 = vrot.lane.b32.xlu0 %v297, 12
        %v690 = vpop.permute.xlu0 %689
        %691 = vrot.lane.b32.xlu0 %v296, 12
        %v692 = vpop.permute.xlu0 %691
        %693 = vrot.lane.b32.xlu0 %v300, 12
        %v694 = vpop.permute.xlu0 %693
        %695 = vrot.lane.b32.xlu0 %v302, 12
        %v696 = vpop.permute.xlu0 %695
        %697 = vrot.lane.b32.xlu0 %v301, 12
        %v698 = vpop.permute.xlu0 %697
        %699 = vrot.lane.b32.xlu0 %v305, 12
        %v700 = vpop.permute.xlu0 %699
        %701 = vrot.lane.b32.xlu0 %v307, 12
        %v702 = vpop.permute.xlu0 %701
        %703 = vrot.lane.b32.xlu0 %v306, 12
        %v704 = vpop.permute.xlu0 %703
        %705 = vrot.lane.b32.xlu0 %v310, 12
        %v706 = vpop.permute.xlu0 %705
        %707 = vrot.lane.b32.xlu0 %v312, 12
        %v708 = vpop.permute.xlu0 %707
        %709 = vrot.lane.b32.xlu0 %v311, 12
        %v710 = vpop.permute.xlu0 %709
        %711 = vrot.lane.b32.xlu0 %v315, 12
        %v712 = vpop.permute.xlu0 %711
        %713 = vrot.lane.b32.xlu0 %v317, 12
        %v714 = vpop.permute.xlu0 %713
        %715 = vrot.lane.b32.xlu0 %v316, 12
        %v716 = vpop.permute.xlu0 %715
        %717 = vrot.lane.b32.xlu0 %v320, 12
        %v718 = vpop.permute.xlu0 %717
        %719 = vrot.lane.b32.xlu0 %v322, 12
        %v720 = vpop.permute.xlu0 %719
        %721 = vrot.lane.b32.xlu0 %v321, 12
        %v722 = vpop.permute.xlu0 %721
        %723 = vrot.lane.b32.xlu0 %v325, 12
        %v724 = vpop.permute.xlu0 %723
        %725 = vrot.lane.b32.xlu0 %v327, 12
        %v726 = vpop.permute.xlu0 %725
        %727 = vrot.lane.b32.xlu0 %v326, 12
        %v728 = vpop.permute.xlu0 %727
        %729 = vrot.lane.b32.xlu0 %v330, 12
        %v730 = vpop.permute.xlu0 %729
        %731 = vrot.lane.b32.xlu0 %v332, 12
        %v732 = vpop.permute.xlu0 %731
        %733 = vrot.lane.b32.xlu0 %v331, 12
        %v734 = vpop.permute.xlu0 %733
        %735 = vrot.lane.b32.xlu0 %v335, 12
        %v736 = vpop.permute.xlu0 %735
        %737 = vrot.lane.b32.xlu0 %v337, 12
        %v738 = vpop.permute.xlu0 %737
        %739 = vrot.lane.b32.xlu0 %v336, 12
        %v740 = vpop.permute.xlu0 %739
        %741 = vrot.lane.b32.xlu0 %v340, 12
        %v742 = vpop.permute.xlu0 %741
        %743 = vrot.lane.b32.xlu0 %v342, 12
        %v744 = vpop.permute.xlu0 %743
        %745 = vrot.lane.b32.xlu0 %v341, 12
        %v746 = vpop.permute.xlu0 %745
        %747 = vrot.lane.b32.xlu0 %v345, 12
        %v748 = vpop.permute.xlu0 %747
        %749 = vrot.lane.b32.xlu0 %v347, 12
        %v750 = vpop.permute.xlu0 %749
        %751 = vrot.lane.b32.xlu0 %v346, 12
        %v752 = vpop.permute.xlu0 %751
        %753 = vrot.lane.b32.xlu0 %v350, 12
        %v754 = vpop.permute.xlu0 %753
        %755 = vrot.lane.b32.xlu0 %v352, 12
        %v756 = vpop.permute.xlu0 %755
        %757 = vrot.lane.b32.xlu0 %v351, 12
        %v758 = vpop.permute.xlu0 %757
        %759 = vrot.lane.b32.xlu0 %v355, 12
        %v760 = vpop.permute.xlu0 %759
        %761 = vrot.lane.b32.xlu0 %v357, 12
        %v762 = vpop.permute.xlu0 %761
        %763 = vrot.lane.b32.xlu0 %v356, 12
        %v764 = vpop.permute.xlu0 %763
        %765 = vrot.lane.b32.xlu0 %v360, 12
        %v766 = vpop.permute.xlu0 %765
        %767 = vrot.lane.b32.xlu0 %v362, 12
        %v768 = vpop.permute.xlu0 %767
        %769 = vrot.lane.b32.xlu0 %v361, 12
        %v770 = vpop.permute.xlu0 %769
        %771 = vrot.lane.b32.xlu0 %v365, 12
        %v772 = vpop.permute.xlu0 %771
        %773 = vrot.lane.b32.xlu0 %v367, 12
        %v774 = vpop.permute.xlu0 %773
        %775 = vrot.lane.b32.xlu0 %v366, 12
        %v776 = vpop.permute.xlu0 %775
        %777 = vrot.lane.b32.xlu0 %v370, 12
        %v778 = vpop.permute.xlu0 %777
        %779 = vrot.lane.b32.xlu0 %v372, 12
        %v780 = vpop.permute.xlu0 %779
        %781 = vrot.lane.b32.xlu0 %v371, 12
        %v782 = vpop.permute.xlu0 %781
        %783 = vrot.lane.b32.xlu0 %v684, 12
        %v784 = vpop.permute.xlu0 %783
        %785 = vrot.lane.b32.xlu0 %v686, 12
        %v786 = vpop.permute.xlu0 %785
        %787 = vrot.lane.b32.xlu0 %v685, 12
        %v788 = vpop.permute.xlu0 %787
        %vm840 = vcmask 31744
        %v841 = vsel %vm840, %v182, %v374
        %v842 = vsel %vm840, %v183, %v376
        %v843 = vsel %vm840, %v184, %v378
        %v844 = vsel %vm840, %v185, %v380
        %v845 = vsel %vm840, %v186, %v382
        %v846 = vsel %vm840, %v187, %v384
        %v847 = vsel %vm840, %v188, %v386
        %v848 = vsel %vm840, %v189, %v388
        %v849 = vsel %vm840, %v190, %v390
        %v850 = vsel %vm840, %v191, %v392
        %v851 = vsel %vm840, %v192, %v394
        %v852 = vsel %vm840, %v193, %v396
        %v853 = vsel %vm840, %v194, %v398
        %v854 = vsel %vm840, %v195, %v400
        %v855 = vsel %vm840, %v196, %v402
        %v856 = vsel %vm840, %v197, %v404
        %v857 = vsel %vm840, %v198, %v406
        %v858 = vsel %vm840, %v199, %v408
        %v859 = vsel %vm840, %v200, %v410
        %v860 = vsel %vm840, %v201, %v412
        %v861 = vsel %vm840, %v202, %v414
        %v862 = vsel %vm840, %v203, %v416
        %v863 = vsel %vm840, %v204, %v418
        %v864 = vsel %vm840, %v205, %v420
        %v865 = vsel %vm840, %v206, %v422
        %v866 = vsel %vm840, %v207, %v424
        %v867 = vsel %vm840, %v208, %v426
        %v868 = vsel %vm840, %v209, %v428
        %v869 = vsel %vm840, %v210, %v430
        %v870 = vsel %vm840, %v211, %v432
        %v871 = vsel %vm840, %v212, %v434
        %v872 = vsel %vm840, %v213, %v436
        %v873 = vsel %vm840, %v214, %v438
        %v874 = vsel %vm840, %v215, %v440
        %v875 = vsel %vm840, %v216, %v442
        %v876 = vsel %vm840, %v217, %v444
        %v877 = vsel %vm840, %v218, %v446
        %v878 = vsel %vm840, %v219, %v448
        %v879 = vsel %vm840, %v220, %v450
        %v880 = vsel %vm840, %v221, %v452
        %v881 = vsel %vm840, %v222, %v454
        %v882 = vsel %vm840, %v223, %v456
        %v883 = vsel %vm840, %v224, %v458
        %v884 = vsel %vm840, %v225, %v460
        %v885 = vsel %vm840, %v226, %v462
        %v886 = vsel %vm840, %v227, %v464
        %v887 = vsel %vm840, %v228, %v466
        %v888 = vsel %vm840, %v229, %v468
        %v889 = vsel %vm840, %v230, %v470
        %v890 = vsel %vm840, %v231, %v472
        %v891 = vsel %vm840, %v232, %v474
        %vm892 = vcmask 64512
        %v893 = vsel %vm892, %v841, %v530
        %v894 = vsel %vm892, %v842, %v532
        %v895 = vsel %vm892, %v843, %v534
        %v896 = vsel %vm892, %v844, %v536
        %v897 = vsel %vm892, %v845, %v538
        %v898 = vsel %vm892, %v846, %v540
        %v899 = vsel %vm892, %v847, %v542
        %v900 = vsel %vm892, %v848, %v544
        %v901 = vsel %vm892, %v849, %v546
        %v902 = vsel %vm892, %v850, %v548
        %v903 = vsel %vm892, %v851, %v550
        %v904 = vsel %vm892, %v852, %v552
        %v905 = vsel %vm892, %v853, %v554
        %v906 = vsel %vm892, %v854, %v556
        %v907 = vsel %vm892, %v855, %v558
        %v908 = vsel %vm892, %v856, %v560
        %v909 = vsel %vm892, %v857, %v562
        %v910 = vsel %vm892, %v858, %v564
        %v911 = vsel %vm892, %v859, %v566
        %v912 = vsel %vm892, %v860, %v568
        %v913 = vsel %vm892, %v861, %v570
        %v914 = vsel %vm892, %v862, %v572
        %v915 = vsel %vm892, %v863, %v574
        %v916 = vsel %vm892, %v864, %v576
        %v917 = vsel %vm892, %v865, %v578
        %v918 = vsel %vm892, %v866, %v580
        %v919 = vsel %vm892, %v867, %v582
        %v920 = vsel %vm892, %v868, %v584
        %v921 = vsel %vm892, %v869, %v586
        %v922 = vsel %vm892, %v870, %v588
        %v923 = vsel %vm892, %v871, %v590
        %v924 = vsel %vm892, %v872, %v592
        %v925 = vsel %vm892, %v873, %v594
        %v926 = vsel %vm892, %v874, %v596
        %v927 = vsel %vm892, %v875, %v598
        %v928 = vsel %vm892, %v876, %v600
        %v929 = vsel %vm892, %v877, %v602
        %v930 = vsel %vm892, %v878, %v604
        %v931 = vsel %vm892, %v879, %v606
        %v932 = vsel %vm892, %v880, %v608
        %v933 = vsel %vm892, %v881, %v610
        %v934 = vsel %vm892, %v882, %v612
        %v935 = vsel %vm892, %v883, %v614
        %v936 = vsel %vm892, %v884, %v616
        %v937 = vsel %vm892, %v885, %v618
        %v938 = vsel %vm892, %v886, %v620
        %v939 = vsel %vm892, %v887, %v622
        %v940 = vsel %vm892, %v888, %v624
        %v941 = vsel %vm892, %v889, %v626
        %v942 = vsel %vm892, %v890, %v628
        %v943 = vsel %vm892, %v891, %v630
        %vm944 = vcmask 97280
        %v945 = vsel %vm944, %v893, %v688
        %v946 = vsel %vm944, %v894, %v690
        %v947 = vsel %vm944, %v895, %v692
        %v948 = vsel %vm944, %v896, %v694
        %v949 = vsel %vm944, %v897, %v696
        %v950 = vsel %vm944, %v898, %v698
        %v951 = vsel %vm944, %v899, %v700
        %v952 = vsel %vm944, %v900, %v702
        %v953 = vsel %vm944, %v901, %v704
        %v954 = vsel %vm944, %v902, %v706
        %v955 = vsel %vm944, %v903, %v708
        %v956 = vsel %vm944, %v904, %v710
        %v957 = vsel %vm944, %v905, %v712
        %v958 = vsel %vm944, %v906, %v714
        %v959 = vsel %vm944, %v907, %v716
        %v960 = vsel %vm944, %v908, %v718
        %v961 = vsel %vm944, %v909, %v720
        %v962 = vsel %vm944, %v910, %v722
        %v963 = vsel %vm944, %v911, %v724
        %v964 = vsel %vm944, %v912, %v726
        %v965 = vsel %vm944, %v913, %v728
        %v966 = vsel %vm944, %v914, %v730
        %v967 = vsel %vm944, %v915, %v732
        %v968 = vsel %vm944, %v916, %v734
        %v969 = vsel %vm944, %v917, %v736
        %v970 = vsel %vm944, %v918, %v738
        %v971 = vsel %vm944, %v919, %v740
        %v972 = vsel %vm944, %v920, %v742
        %v973 = vsel %vm944, %v921, %v744
        %v974 = vsel %vm944, %v922, %v746
        %v975 = vsel %vm944, %v923, %v748
        %v976 = vsel %vm944, %v924, %v750
        %v977 = vsel %vm944, %v925, %v752
        %v978 = vsel %vm944, %v926, %v754
        %v979 = vsel %vm944, %v927, %v756
        %v980 = vsel %vm944, %v928, %v758
        %v981 = vsel %vm944, %v929, %v760
        %v982 = vsel %vm944, %v930, %v762
        %v983 = vsel %vm944, %v931, %v764
        %v984 = vsel %vm944, %v932, %v766
        %v985 = vsel %vm944, %v933, %v768
        %v986 = vsel %vm944, %v934, %v770
        %v987 = vsel %vm944, %v935, %v772
        %v988 = vsel %vm944, %v936, %v774
        %v989 = vsel %vm944, %v937, %v776
        %v990 = vsel %vm944, %v938, %v778
        %v991 = vsel %vm944, %v939, %v780
        %v992 = vsel %vm944, %v940, %v782
        %v993 = vsel %vm944, %v941, %v784
        %v994 = vsel %vm944, %v942, %v786
        %v995 = vsel %vm944, %v943, %v788
        %v1047 = vrot.slane %v945, 1
        %v1048 = vrot.slane %v945, 2
        %v1049 = vrot.slane %v945, 3
        %v1050 = vrot.slane %v945, 4
        %v1051 = vrot.slane %v945, 5
        %v1052 = vrot.slane %v945, 6
        %v1053 = vrot.slane %v945, 7
        %v1054 = vrot.slane %v946, 1
        %v1055 = vrot.slane %v946, 2
        %v1056 = vrot.slane %v946, 3
        %v1057 = vrot.slane %v946, 4
        %v1058 = vrot.slane %v946, 5
        %v1059 = vrot.slane %v946, 6
        %v1060 = vrot.slane %v946, 7
        %v1061 = vrot.slane %v948, 1
        %v1062 = vrot.slane %v948, 2
        %v1063 = vrot.slane %v948, 3
        %v1064 = vrot.slane %v948, 4
        %v1065 = vrot.slane %v948, 5
        %v1066 = vrot.slane %v948, 6
        %v1067 = vrot.slane %v948, 7
        %v1068 = vrot.slane %v949, 1
        %v1069 = vrot.slane %v949, 2
        %v1070 = vrot.slane %v949, 3
        %v1071 = vrot.slane %v949, 4
        %v1072 = vrot.slane %v949, 5
        %v1073 = vrot.slane %v949, 6
        %v1074 = vrot.slane %v949, 7
        %v1075 = vrot.slane %v951, 1
        %v1076 = vrot.slane %v951, 2
        %v1077 = vrot.slane %v951, 3
        %v1078 = vrot.slane %v951, 4
        %v1079 = vrot.slane %v951, 5
        %v1080 = vrot.slane %v951, 6
        %v1081 = vrot.slane %v951, 7
        %v1082 = vrot.slane %v952, 1
        %v1083 = vrot.slane %v952, 2
        %v1084 = vrot.slane %v952, 3
        %v1085 = vrot.slane %v952, 4
        %v1086 = vrot.slane %v952, 5
        %v1087 = vrot.slane %v952, 6
        %v1088 = vrot.slane %v952, 7
        %v1089 = vrot.slane %v954, 1
        %v1090 = vrot.slane %v954, 2
        %v1091 = vrot.slane %v954, 3
        %v1092 = vrot.slane %v954, 4
        %v1093 = vrot.slane %v954, 5
        %v1094 = vrot.slane %v954, 6
        %v1095 = vrot.slane %v954, 7
        %v1096 = vrot.slane %v955, 1
        %v1097 = vrot.slane %v955, 2
        %v1098 = vrot.slane %v955, 3
        %v1099 = vrot.slane %v955, 4
        %v1100 = vrot.slane %v955, 5
        %v1101 = vrot.slane %v955, 6
        %v1102 = vrot.slane %v955, 7
        %v1103 = vrot.slane %v957, 1
        %v1104 = vrot.slane %v957, 2
        %v1105 = vrot.slane %v957, 3
        %v1106 = vrot.slane %v957, 4
        %v1107 = vrot.slane %v957, 5
        %v1108 = vrot.slane %v957, 6
        %v1109 = vrot.slane %v957, 7
        %v1110 = vrot.slane %v958, 1
        %v1111 = vrot.slane %v958, 2
        %v1112 = vrot.slane %v958, 3
        %v1113 = vrot.slane %v958, 4
        %v1114 = vrot.slane %v958, 5
        %v1115 = vrot.slane %v958, 6
        %v1116 = vrot.slane %v958, 7
        %v1117 = vrot.slane %v960, 1
        %v1118 = vrot.slane %v960, 2
        %v1119 = vrot.slane %v960, 3
        %v1120 = vrot.slane %v960, 4
        %v1121 = vrot.slane %v960, 5
        %v1122 = vrot.slane %v960, 6
        %v1123 = vrot.slane %v960, 7
        %v1124 = vrot.slane %v961, 1
        %v1125 = vrot.slane %v961, 2
        %v1126 = vrot.slane %v961, 3
        %v1127 = vrot.slane %v961, 4
        %v1128 = vrot.slane %v961, 5
        %v1129 = vrot.slane %v961, 6
        %v1130 = vrot.slane %v961, 7
        %v1131 = vrot.slane %v963, 1
        %v1132 = vrot.slane %v963, 2
        %v1133 = vrot.slane %v963, 3
        %v1134 = vrot.slane %v963, 4
        %v1135 = vrot.slane %v963, 5
        %v1136 = vrot.slane %v963, 6
        %v1137 = vrot.slane %v963, 7
        %v1138 = vrot.slane %v964, 1
        %v1139 = vrot.slane %v964, 2
        %v1140 = vrot.slane %v964, 3
        %v1141 = vrot.slane %v964, 4
        %v1142 = vrot.slane %v964, 5
        %v1143 = vrot.slane %v964, 6
        %v1144 = vrot.slane %v964, 7
        %v1145 = vrot.slane %v966, 1
        %v1146 = vrot.slane %v966, 2
        %v1147 = vrot.slane %v966, 3
        %v1148 = vrot.slane %v966, 4
        %v1149 = vrot.slane %v966, 5
        %v1150 = vrot.slane %v966, 6
        %v1151 = vrot.slane %v966, 7
        %v1152 = vrot.slane %v967, 1
        %v1153 = vrot.slane %v967, 2
        %v1154 = vrot.slane %v967, 3
        %v1155 = vrot.slane %v967, 4
        %v1156 = vrot.slane %v967, 5
        %v1157 = vrot.slane %v967, 6
        %v1158 = vrot.slane %v967, 7
        %v1159 = vrot.slane %v969, 1
        %v1160 = vrot.slane %v969, 2
        %v1161 = vrot.slane %v969, 3
        %v1162 = vrot.slane %v969, 4
        %v1163 = vrot.slane %v969, 5
        %v1164 = vrot.slane %v969, 6
        %v1165 = vrot.slane %v969, 7
        %v1166 = vrot.slane %v970, 1
        %v1167 = vrot.slane %v970, 2
        %v1168 = vrot.slane %v970, 3
        %v1169 = vrot.slane %v970, 4
        %v1170 = vrot.slane %v970, 5
        %v1171 = vrot.slane %v970, 6
        %v1172 = vrot.slane %v970, 7
        %v1173 = vrot.slane %v972, 1
        %v1174 = vrot.slane %v972, 2
        %v1175 = vrot.slane %v972, 3
        %v1176 = vrot.slane %v972, 4
        %v1177 = vrot.slane %v972, 5
        %v1178 = vrot.slane %v972, 6
        %v1179 = vrot.slane %v972, 7
        %v1180 = vrot.slane %v973, 1
        %v1181 = vrot.slane %v973, 2
        %v1182 = vrot.slane %v973, 3
        %v1183 = vrot.slane %v973, 4
        %v1184 = vrot.slane %v973, 5
        %v1185 = vrot.slane %v973, 6
        %v1186 = vrot.slane %v973, 7
        %v1187 = vrot.slane %v975, 1
        %v1188 = vrot.slane %v975, 2
        %v1189 = vrot.slane %v975, 3
        %v1190 = vrot.slane %v975, 4
        %v1191 = vrot.slane %v975, 5
        %v1192 = vrot.slane %v975, 6
        %v1193 = vrot.slane %v975, 7
        %v1194 = vrot.slane %v976, 1
        %v1195 = vrot.slane %v976, 2
        %v1196 = vrot.slane %v976, 3
        %v1197 = vrot.slane %v976, 4
        %v1198 = vrot.slane %v976, 5
        %v1199 = vrot.slane %v976, 6
        %v1200 = vrot.slane %v976, 7
        %v1201 = vrot.slane %v978, 1
        %v1202 = vrot.slane %v978, 2
        %v1203 = vrot.slane %v978, 3
        %v1204 = vrot.slane %v978, 4
        %v1205 = vrot.slane %v978, 5
        %v1206 = vrot.slane %v978, 6
        %v1207 = vrot.slane %v978, 7
        %v1208 = vrot.slane %v979, 1
        %v1209 = vrot.slane %v979, 2
        %v1210 = vrot.slane %v979, 3
        %v1211 = vrot.slane %v979, 4
        %v1212 = vrot.slane %v979, 5
        %v1213 = vrot.slane %v979, 6
        %v1214 = vrot.slane %v979, 7
        %v1215 = vrot.slane %v981, 1
        %v1216 = vrot.slane %v981, 2
        %v1217 = vrot.slane %v981, 3
        %v1218 = vrot.slane %v981, 4
        %v1219 = vrot.slane %v981, 5
        %v1220 = vrot.slane %v981, 6
        %v1221 = vrot.slane %v981, 7
        %v1222 = vrot.slane %v982, 1
        %v1223 = vrot.slane %v982, 2
        %v1224 = vrot.slane %v982, 3
        %v1225 = vrot.slane %v982, 4
        %v1226 = vrot.slane %v982, 5
        %v1227 = vrot.slane %v982, 6
        %v1228 = vrot.slane %v982, 7
        %v1229 = vrot.slane %v984, 1
        %v1230 = vrot.slane %v984, 2
        %v1231 = vrot.slane %v984, 3
        %v1232 = vrot.slane %v984, 4
        %v1233 = vrot.slane %v984, 5
        %v1234 = vrot.slane %v984, 6
        %v1235 = vrot.slane %v984, 7
        %v1236 = vrot.slane %v985, 1
        %v1237 = vrot.slane %v985, 2
        %v1238 = vrot.slane %v985, 3
        %v1239 = vrot.slane %v985, 4
        %v1240 = vrot.slane %v985, 5
        %v1241 = vrot.slane %v985, 6
        %v1242 = vrot.slane %v985, 7
        %v1243 = vrot.slane %v987, 1
        %v1244 = vrot.slane %v987, 2
        %v1245 = vrot.slane %v987, 3
        %v1246 = vrot.slane %v987, 4
        %v1247 = vrot.slane %v987, 5
        %v1248 = vrot.slane %v987, 6
        %v1249 = vrot.slane %v987, 7
        %v1250 = vrot.slane %v988, 1
        %v1251 = vrot.slane %v988, 2
        %v1252 = vrot.slane %v988, 3
        %v1253 = vrot.slane %v988, 4
        %v1254 = vrot.slane %v988, 5
        %v1255 = vrot.slane %v988, 6
        %v1256 = vrot.slane %v988, 7
        %v1257 = vrot.slane %v990, 1
        %v1258 = vrot.slane %v990, 2
        %v1259 = vrot.slane %v990, 3
        %v1260 = vrot.slane %v990, 4
        %v1261 = vrot.slane %v990, 5
        %v1262 = vrot.slane %v990, 6
        %v1263 = vrot.slane %v990, 7
        %v1264 = vrot.slane %v991, 1
        %v1265 = vrot.slane %v991, 2
        %v1266 = vrot.slane %v991, 3
        %v1267 = vrot.slane %v991, 4
        %v1268 = vrot.slane %v991, 5
        %v1269 = vrot.slane %v991, 6
        %v1270 = vrot.slane %v991, 7
        %v1271 = vrot.slane %v993, 1
        %v1272 = vrot.slane %v993, 2
        %v1273 = vrot.slane %v993, 3
        %v1274 = vrot.slane %v993, 4
        %v1275 = vrot.slane %v993, 5
        %v1276 = vrot.slane %v993, 6
        %v1277 = vrot.slane %v993, 7
        %v1278 = vrot.slane %v994, 1
        %v1279 = vrot.slane %v994, 2
        %v1280 = vrot.slane %v994, 3
        %v1281 = vrot.slane %v994, 4
        %v1282 = vrot.slane %v994, 5
        %v1283 = vrot.slane %v994, 6
        %v1284 = vrot.slane %v994, 7
        %v1285 = vld [vmem:[%s1] sm:$0xff]
        %v1286 = vld [vmem:[%s1 + $0x8] sm:$0xff]
        %1287 = vst [vmem:[#allocation1] ss:$9 sm:$0xff] %v945
        %s1288 = scalar_lea.vmem [#allocation1], 1
        %1289 = vst [vmem:[%s1288] ss:$9 sm:$0xff] %v1047
        %s1290 = scalar_lea.vmem [#allocation1], 2
        %1291 = vst [vmem:[%s1290] ss:$9 sm:$0xff] %v1048
        %s1292 = scalar_lea.vmem [#allocation1], 3
        %1293 = vst [vmem:[%s1292] ss:$9 sm:$0xff] %v1049
        %s1294 = scalar_lea.vmem [#allocation1], 4
        %1295 = vst [vmem:[%s1294] ss:$9 sm:$0xff] %v1050
        %s1296 = scalar_lea.vmem [#allocation1], 5
        %1297 = vst [vmem:[%s1296] ss:$9 sm:$0xff] %v1051
        %s1298 = scalar_lea.vmem [#allocation1], 6
        %1299 = vst [vmem:[%s1298] ss:$9 sm:$0xff] %v1052
        %s1300 = scalar_lea.vmem [#allocation1], 7
        %1301 = vst [vmem:[%s1300] ss:$9 sm:$0xff] %v1053
        %v1302 = vld [vmem:[#allocation1] sm:$0xff]
        %1303 = vst [vmem:[#allocation1] ss:$9 sm:$0xff] %v946
        %1304 = vst [vmem:[%s1288] ss:$9 sm:$0xff] %v1054
        %1305 = vst [vmem:[%s1290] ss:$9 sm:$0xff] %v1055
        %1306 = vst [vmem:[%s1292] ss:$9 sm:$0xff] %v1056
        %1307 = vst [vmem:[%s1294] ss:$9 sm:$0xff] %v1057
        %1308 = vst [vmem:[%s1296] ss:$9 sm:$0xff] %v1058
        %1309 = vst [vmem:[%s1298] ss:$9 sm:$0xff] %v1059
        %1310 = vst [vmem:[%s1300] ss:$9 sm:$0xff] %v1060
        %v1311 = vld [vmem:[#allocation1] sm:$0xff]
        %1312 = vst [vmem:[#allocation1] ss:$9 sm:$0xff] %v947
        %1313 = vst [vmem:[%s1288] ss:$9 sm:$0xff] %v948
        %1314 = vst [vmem:[%s1290] ss:$9 sm:$0xff] %v1061
        %1315 = vst [vmem:[%s1292] ss:$9 sm:$0xff] %v1062
        %1316 = vst [vmem:[%s1294] ss:$9 sm:$0xff] %v1063
        %1317 = vst [vmem:[%s1296] ss:$9 sm:$0xff] %v1064
        %1318 = vst [vmem:[%s1298] ss:$9 sm:$0xff] %v1065
        %1319 = vst [vmem:[%s1300] ss:$9 sm:$0xff] %v1066
        %v1320 = vld [vmem:[#allocation1] sm:$0xff]
        %1321 = vst [vmem:[#allocation1] ss:$9 sm:$0xff] %v1067
        %1322 = vst [vmem:[%s1288] ss:$9 sm:$0xff] %v949
        %1323 = vst [vmem:[%s1290] ss:$9 sm:$0xff] %v1068
        %1324 = vst [vmem:[%s1292] ss:$9 sm:$0xff] %v1069
        %1325 = vst [vmem:[%s1294] ss:$9 sm:$0xff] %v1070
        %1326 = vst [vmem:[%s1296] ss:$9 sm:$0xff] %v1071
        %1327 = vst [vmem:[%s1298] ss:$9 sm:$0xff] %v1072
        %1328 = vst [vmem:[%s1300] ss:$9 sm:$0xff] %v1073
        %v1329 = vld [vmem:[#allocation1] sm:$0xff]
        %1330 = vst [vmem:[#allocation1] ss:$9 sm:$0xff] %v1074
        %1331 = vst [vmem:[%s1288] ss:$9 sm:$0xff] %v950
        %1332 = vst [vmem:[%s1290] ss:$9 sm:$0xff] %v951
        %1333 = vst [vmem:[%s1292] ss:$9 sm:$0xff] %v1075
        %1334 = vst [vmem:[%s1294] ss:$9 sm:$0xff] %v1076
        %1335 = vst [vmem:[%s1296] ss:$9 sm:$0xff] %v1077
        %1336 = vst [vmem:[%s1298] ss:$9 sm:$0xff] %v1078
        %1337 = vst [vmem:[%s1300] ss:$9 sm:$0xff] %v1079
        %v1338 = vld [vmem:[#allocation1] sm:$0xff]
        %1339 = vst [vmem:[#allocation1] ss:$9 sm:$0xff] %v1080
        %1340 = vst [vmem:[%s1288] ss:$9 sm:$0xff] %v1081
        %1341 = vst [vmem:[%s1290] ss:$9 sm:$0xff] %v952
        %1342 = vst [vmem:[%s1292] ss:$9 sm:$0xff] %v1082
        %1343 = vst [vmem:[%s1294] ss:$9 sm:$0xff] %v1083
        %1344 = vst [vmem:[%s1296] ss:$9 sm:$0xff] %v1084
        %1345 = vst [vmem:[%s1298] ss:$9 sm:$0xff] %v1085
        %1346 = vst [vmem:[%s1300] ss:$9 sm:$0xff] %v1086
        %v1347 = vld [vmem:[#allocation1] sm:$0xff]
        %1348 = vst [vmem:[#allocation1] ss:$9 sm:$0xff] %v1087
        %1349 = vst [vmem:[%s1288] ss:$9 sm:$0xff] %v1088
        %1350 = vst [vmem:[%s1290] ss:$9 sm:$0xff] %v953
        %1351 = vst [vmem:[%s1292] ss:$9 sm:$0xff] %v954
        %1352 = vst [vmem:[%s1294] ss:$9 sm:$0xff] %v1089
        %1353 = vst [vmem:[%s1296] ss:$9 sm:$0xff] %v1090
        %1354 = vst [vmem:[%s1298] ss:$9 sm:$0xff] %v1091
        %1355 = vst [vmem:[%s1300] ss:$9 sm:$0xff] %v1092
        %v1356 = vld [vmem:[#allocation1] sm:$0xff]
        %1357 = vst [vmem:[#allocation1] ss:$9 sm:$0xff] %v1093
        %1358 = vst [vmem:[%s1288] ss:$9 sm:$0xff] %v1094
        %1359 = vst [vmem:[%s1290] ss:$9 sm:$0xff] %v1095
        %1360 = vst [vmem:[%s1292] ss:$9 sm:$0xff] %v955
        %1361 = vst [vmem:[%s1294] ss:$9 sm:$0xff] %v1096
        %1362 = vst [vmem:[%s1296] ss:$9 sm:$0xff] %v1097
        %1363 = vst [vmem:[%s1298] ss:$9 sm:$0xff] %v1098
        %1364 = vst [vmem:[%s1300] ss:$9 sm:$0xff] %v1099
        %v1365 = vld [vmem:[#allocation1] sm:$0xff]
        %1366 = vst [vmem:[#allocation1] ss:$9 sm:$0xff] %v1100
        %1367 = vst [vmem:[%s1288] ss:$9 sm:$0xff] %v1101
        %1368 = vst [vmem:[%s1290] ss:$9 sm:$0xff] %v1102
        %1369 = vst [vmem:[%s1292] ss:$9 sm:$0xff] %v956
        %1370 = vst [vmem:[%s1294] ss:$9 sm:$0xff] %v957
        %1371 = vst [vmem:[%s1296] ss:$9 sm:$0xff] %v1103
        %1372 = vst [vmem:[%s1298] ss:$9 sm:$0xff] %v1104
        %1373 = vst [vmem:[%s1300] ss:$9 sm:$0xff] %v1105
        %v1374 = vld [vmem:[#allocation1] sm:$0xff]
        %1375 = vst [vmem:[#allocation1] ss:$9 sm:$0xff] %v1106
        %1376 = vst [vmem:[%s1288] ss:$9 sm:$0xff] %v1107
        %1377 = vst [vmem:[%s1290] ss:$9 sm:$0xff] %v1108
        %1378 = vst [vmem:[%s1292] ss:$9 sm:$0xff] %v1109
        %1379 = vst [vmem:[%s1294] ss:$9 sm:$0xff] %v958
        %1380 = vst [vmem:[%s1296] ss:$9 sm:$0xff] %v1110
        %1381 = vst [vmem:[%s1298] ss:$9 sm:$0xff] %v1111
        %1382 = vst [vmem:[%s1300] ss:$9 sm:$0xff] %v1112
        %v1383 = vld [vmem:[#allocation1] sm:$0xff]
        %1384 = vst [vmem:[#allocation1] ss:$9 sm:$0xff] %v1113
        %1385 = vst [vmem:[%s1288] ss:$9 sm:$0xff] %v1114
        %1386 = vst [vmem:[%s1290] ss:$9 sm:$0xff] %v1115
        %1387 = vst [vmem:[%s1292] ss:$9 sm:$0xff] %v1116
        %1388 = vst [vmem:[%s1294] ss:$9 sm:$0xff] %v959
        %1389 = vst [vmem:[%s1296] ss:$9 sm:$0xff] %v960
        %1390 = vst [vmem:[%s1298] ss:$9 sm:$0xff] %v1117
        %1391 = vst [vmem:[%s1300] ss:$9 sm:$0xff] %v1118
        %v1392 = vld [vmem:[#allocation1] sm:$0xff]
        %1393 = vst [vmem:[#allocation1] ss:$9 sm:$0xff] %v1119
        %1394 = vst [vmem:[%s1288] ss:$9 sm:$0xff] %v1120
        %1395 = vst [vmem:[%s1290] ss:$9 sm:$0xff] %v1121
        %1396 = vst [vmem:[%s1292] ss:$9 sm:$0xff] %v1122
        %1397 = vst [vmem:[%s1294] ss:$9 sm:$0xff] %v1123
        %1398 = vst [vmem:[%s1296] ss:$9 sm:$0xff] %v961
        %1399 = vst [vmem:[%s1298] ss:$9 sm:$0xff] %v1124
        %1400 = vst [vmem:[%s1300] ss:$9 sm:$0xff] %v1125
        %v1401 = vld [vmem:[#allocation1] sm:$0xff]
        %1402 = vst [vmem:[#allocation1] ss:$9 sm:$0xff] %v1126
        %1403 = vst [vmem:[%s1288] ss:$9 sm:$0xff] %v1127
        %1404 = vst [vmem:[%s1290] ss:$9 sm:$0xff] %v1128
        %1405 = vst [vmem:[%s1292] ss:$9 sm:$0xff] %v1129
        %1406 = vst [vmem:[%s1294] ss:$9 sm:$0xff] %v1130
        %1407 = vst [vmem:[%s1296] ss:$9 sm:$0xff] %v962
        %1408 = vst [vmem:[%s1298] ss:$9 sm:$0xff] %v963
        %1409 = vst [vmem:[%s1300] ss:$9 sm:$0xff] %v1131
        %v1410 = vld [vmem:[#allocation1] sm:$0xff]
        %1411 = vst [vmem:[#allocation1] ss:$9 sm:$0xff] %v1132
        %1412 = vst [vmem:[%s1288] ss:$9 sm:$0xff] %v1133
        %1413 = vst [vmem:[%s1290] ss:$9 sm:$0xff] %v1134
        %1414 = vst [vmem:[%s1292] ss:$9 sm:$0xff] %v1135
        %1415 = vst [vmem:[%s1294] ss:$9 sm:$0xff] %v1136
        %1416 = vst [vmem:[%s1296] ss:$9 sm:$0xff] %v1137
        %1417 = vst [vmem:[%s1298] ss:$9 sm:$0xff] %v964
        %1418 = vst [vmem:[%s1300] ss:$9 sm:$0xff] %v1138
        %v1419 = vld [vmem:[#allocation1] sm:$0xff]
        %1420 = vst [vmem:[#allocation1] ss:$9 sm:$0xff] %v1139
        %1421 = vst [vmem:[%s1288] ss:$9 sm:$0xff] %v1140
        %1422 = vst [vmem:[%s1290] ss:$9 sm:$0xff] %v1141
        %1423 = vst [vmem:[%s1292] ss:$9 sm:$0xff] %v1142
        %1424 = vst [vmem:[%s1294] ss:$9 sm:$0xff] %v1143
        %1425 = vst [vmem:[%s1296] ss:$9 sm:$0xff] %v1144
        %1426 = vst [vmem:[%s1298] ss:$9 sm:$0xff] %v965
        %1427 = vst [vmem:[%s1300] ss:$9 sm:$0xff] %v966
        %v1428 = vld [vmem:[#allocation1] sm:$0xff]
        %1429 = vst [vmem:[#allocation1] ss:$9 sm:$0xff] %v1145
        %1430 = vst [vmem:[%s1288] ss:$9 sm:$0xff] %v1146
        %1431 = vst [vmem:[%s1290] ss:$9 sm:$0xff] %v1147
        %1432 = vst [vmem:[%s1292] ss:$9 sm:$0xff] %v1148
        %1433 = vst [vmem:[%s1294] ss:$9 sm:$0xff] %v1149
        %1434 = vst [vmem:[%s1296] ss:$9 sm:$0xff] %v1150
        %1435 = vst [vmem:[%s1298] ss:$9 sm:$0xff] %v1151
        %1436 = vst [vmem:[%s1300] ss:$9 sm:$0xff] %v967
        %v1437 = vld [vmem:[#allocation1] sm:$0xff]
        %1438 = vst [vmem:[#allocation1] ss:$9 sm:$0xff] %v1152
        %1439 = vst [vmem:[%s1288] ss:$9 sm:$0xff] %v1153
        %1440 = vst [vmem:[%s1290] ss:$9 sm:$0xff] %v1154
        %1441 = vst [vmem:[%s1292] ss:$9 sm:$0xff] %v1155
        %1442 = vst [vmem:[%s1294] ss:$9 sm:$0xff] %v1156
        %1443 = vst [vmem:[%s1296] ss:$9 sm:$0xff] %v1157
        %1444 = vst [vmem:[%s1298] ss:$9 sm:$0xff] %v1158
        %1445 = vst [vmem:[%s1300] ss:$9 sm:$0xff] %v968
        %v1446 = vld [vmem:[#allocation1] sm:$0xff]
        %1447 = vst [vmem:[#allocation1] ss:$9 sm:$0xff] %v969
        %1448 = vst [vmem:[%s1288] ss:$9 sm:$0xff] %v1159
        %1449 = vst [vmem:[%s1290] ss:$9 sm:$0xff] %v1160
        %1450 = vst [vmem:[%s1292] ss:$9 sm:$0xff] %v1161
        %1451 = vst [vmem:[%s1294] ss:$9 sm:$0xff] %v1162
        %1452 = vst [vmem:[%s1296] ss:$9 sm:$0xff] %v1163
        %1453 = vst [vmem:[%s1298] ss:$9 sm:$0xff] %v1164
        %1454 = vst [vmem:[%s1300] ss:$9 sm:$0xff] %v1165
        %v1455 = vld [vmem:[#allocation1] sm:$0xff]
        %1456 = vst [vmem:[#allocation1] ss:$9 sm:$0xff] %v970
        %1457 = vst [vmem:[%s1288] ss:$9 sm:$0xff] %v1166
        %1458 = vst [vmem:[%s1290] ss:$9 sm:$0xff] %v1167
        %1459 = vst [vmem:[%s1292] ss:$9 sm:$0xff] %v1168
        %1460 = vst [vmem:[%s1294] ss:$9 sm:$0xff] %v1169
        %1461 = vst [vmem:[%s1296] ss:$9 sm:$0xff] %v1170
        %1462 = vst [vmem:[%s1298] ss:$9 sm:$0xff] %v1171
        %1463 = vst [vmem:[%s1300] ss:$9 sm:$0xff] %v1172
        %v1464 = vld [vmem:[#allocation1] sm:$0xff]
        %1465 = vst [vmem:[#allocation1] ss:$9 sm:$0xff] %v971
        %1466 = vst [vmem:[%s1288] ss:$9 sm:$0xff] %v972
        %1467 = vst [vmem:[%s1290] ss:$9 sm:$0xff] %v1173
        %1468 = vst [vmem:[%s1292] ss:$9 sm:$0xff] %v1174
        %1469 = vst [vmem:[%s1294] ss:$9 sm:$0xff] %v1175
        %1470 = vst [vmem:[%s1296] ss:$9 sm:$0xff] %v1176
        %1471 = vst [vmem:[%s1298] ss:$9 sm:$0xff] %v1177
        %1472 = vst [vmem:[%s1300] ss:$9 sm:$0xff] %v1178
        %v1473 = vld [vmem:[#allocation1] sm:$0xff]
        %1474 = vst [vmem:[#allocation1] ss:$9 sm:$0xff] %v1179
        %1475 = vst [vmem:[%s1288] ss:$9 sm:$0xff] %v973
        %1476 = vst [vmem:[%s1290] ss:$9 sm:$0xff] %v1180
        %1477 = vst [vmem:[%s1292] ss:$9 sm:$0xff] %v1181
        %1478 = vst [vmem:[%s1294] ss:$9 sm:$0xff] %v1182
        %1479 = vst [vmem:[%s1296] ss:$9 sm:$0xff] %v1183
        %1480 = vst [vmem:[%s1298] ss:$9 sm:$0xff] %v1184
        %1481 = vst [vmem:[%s1300] ss:$9 sm:$0xff] %v1185
        %v1482 = vld [vmem:[#allocation1] sm:$0xff]
        %1483 = vst [vmem:[#allocation1] ss:$9 sm:$0xff] %v1186
        %1484 = vst [vmem:[%s1288] ss:$9 sm:$0xff] %v974
        %1485 = vst [vmem:[%s1290] ss:$9 sm:$0xff] %v975
        %1486 = vst [vmem:[%s1292] ss:$9 sm:$0xff] %v1187
        %1487 = vst [vmem:[%s1294] ss:$9 sm:$0xff] %v1188
        %1488 = vst [vmem:[%s1296] ss:$9 sm:$0xff] %v1189
        %1489 = vst [vmem:[%s1298] ss:$9 sm:$0xff] %v1190
        %1490 = vst [vmem:[%s1300] ss:$9 sm:$0xff] %v1191
        %v1491 = vld [vmem:[#allocation1] sm:$0xff]
        %1492 = vst [vmem:[#allocation1] ss:$9 sm:$0xff] %v1192
        %1493 = vst [vmem:[%s1288] ss:$9 sm:$0xff] %v1193
        %1494 = vst [vmem:[%s1290] ss:$9 sm:$0xff] %v976
        %1495 = vst [vmem:[%s1292] ss:$9 sm:$0xff] %v1194
        %1496 = vst [vmem:[%s1294] ss:$9 sm:$0xff] %v1195
        %1497 = vst [vmem:[%s1296] ss:$9 sm:$0xff] %v1196
        %1498 = vst [vmem:[%s1298] ss:$9 sm:$0xff] %v1197
        %1499 = vst [vmem:[%s1300] ss:$9 sm:$0xff] %v1198
        %v1500 = vld [vmem:[#allocation1] sm:$0xff]
        %1501 = vst [vmem:[#allocation1] ss:$9 sm:$0xff] %v1199
        %1502 = vst [vmem:[%s1288] ss:$9 sm:$0xff] %v1200
        %1503 = vst [vmem:[%s1290] ss:$9 sm:$0xff] %v977
        %1504 = vst [vmem:[%s1292] ss:$9 sm:$0xff] %v978
        %1505 = vst [vmem:[%s1294] ss:$9 sm:$0xff] %v1201
        %1506 = vst [vmem:[%s1296] ss:$9 sm:$0xff] %v1202
        %1507 = vst [vmem:[%s1298] ss:$9 sm:$0xff] %v1203
        %1508 = vst [vmem:[%s1300] ss:$9 sm:$0xff] %v1204
        %v1509 = vld [vmem:[#allocation1] sm:$0xff]
        %1510 = vst [vmem:[#allocation1] ss:$9 sm:$0xff] %v1205
        %1511 = vst [vmem:[%s1288] ss:$9 sm:$0xff] %v1206
        %1512 = vst [vmem:[%s1290] ss:$9 sm:$0xff] %v1207
        %1513 = vst [vmem:[%s1292] ss:$9 sm:$0xff] %v979
        %1514 = vst [vmem:[%s1294] ss:$9 sm:$0xff] %v1208
        %1515 = vst [vmem:[%s1296] ss:$9 sm:$0xff] %v1209
        %1516 = vst [vmem:[%s1298] ss:$9 sm:$0xff] %v1210
        %1517 = vst [vmem:[%s1300] ss:$9 sm:$0xff] %v1211
        %v1518 = vld [vmem:[#allocation1] sm:$0xff]
        %1519 = vst [vmem:[#allocation1] ss:$9 sm:$0xff] %v1212
        %1520 = vst [vmem:[%s1288] ss:$9 sm:$0xff] %v1213
        %1521 = vst [vmem:[%s1290] ss:$9 sm:$0xff] %v1214
        %1522 = vst [vmem:[%s1292] ss:$9 sm:$0xff] %v980
        %1523 = vst [vmem:[%s1294] ss:$9 sm:$0xff] %v981
        %1524 = vst [vmem:[%s1296] ss:$9 sm:$0xff] %v1215
        %1525 = vst [vmem:[%s1298] ss:$9 sm:$0xff] %v1216
        %1526 = vst [vmem:[%s1300] ss:$9 sm:$0xff] %v1217
        %v1527 = vld [vmem:[#allocation1] sm:$0xff]
        %1528 = vst [vmem:[#allocation1] ss:$9 sm:$0xff] %v1218
        %1529 = vst [vmem:[%s1288] ss:$9 sm:$0xff] %v1219
        %1530 = vst [vmem:[%s1290] ss:$9 sm:$0xff] %v1220
        %1531 = vst [vmem:[%s1292] ss:$9 sm:$0xff] %v1221
        %1532 = vst [vmem:[%s1294] ss:$9 sm:$0xff] %v982
        %1533 = vst [vmem:[%s1296] ss:$9 sm:$0xff] %v1222
        %1534 = vst [vmem:[%s1298] ss:$9 sm:$0xff] %v1223
        %1535 = vst [vmem:[%s1300] ss:$9 sm:$0xff] %v1224
        %v1536 = vld [vmem:[#allocation1] sm:$0xff]
        %1537 = vst [vmem:[#allocation1] ss:$9 sm:$0xff] %v1225
        %1538 = vst [vmem:[%s1288] ss:$9 sm:$0xff] %v1226
        %1539 = vst [vmem:[%s1290] ss:$9 sm:$0xff] %v1227
        %1540 = vst [vmem:[%s1292] ss:$9 sm:$0xff] %v1228
        %1541 = vst [vmem:[%s1294] ss:$9 sm:$0xff] %v983
        %1542 = vst [vmem:[%s1296] ss:$9 sm:$0xff] %v984
        %1543 = vst [vmem:[%s1298] ss:$9 sm:$0xff] %v1229
        %1544 = vst [vmem:[%s1300] ss:$9 sm:$0xff] %v1230
        %v1545 = vld [vmem:[#allocation1] sm:$0xff]
        %1546 = vst [vmem:[#allocation1] ss:$9 sm:$0xff] %v1231
        %1547 = vst [vmem:[%s1288] ss:$9 sm:$0xff] %v1232
        %1548 = vst [vmem:[%s1290] ss:$9 sm:$0xff] %v1233
        %1549 = vst [vmem:[%s1292] ss:$9 sm:$0xff] %v1234
        %1550 = vst [vmem:[%s1294] ss:$9 sm:$0xff] %v1235
        %1551 = vst [vmem:[%s1296] ss:$9 sm:$0xff] %v985
        %1552 = vst [vmem:[%s1298] ss:$9 sm:$0xff] %v1236
        %1553 = vst [vmem:[%s1300] ss:$9 sm:$0xff] %v1237
        %v1554 = vld [vmem:[#allocation1] sm:$0xff]
        %1555 = vst [vmem:[#allocation1] ss:$9 sm:$0xff] %v1238
        %1556 = vst [vmem:[%s1288] ss:$9 sm:$0xff] %v1239
        %1557 = vst [vmem:[%s1290] ss:$9 sm:$0xff] %v1240
        %1558 = vst [vmem:[%s1292] ss:$9 sm:$0xff] %v1241
        %1559 = vst [vmem:[%s1294] ss:$9 sm:$0xff] %v1242
        %1560 = vst [vmem:[%s1296] ss:$9 sm:$0xff] %v986
        %1561 = vst [vmem:[%s1298] ss:$9 sm:$0xff] %v987
        %1562 = vst [vmem:[%s1300] ss:$9 sm:$0xff] %v1243
        %v1563 = vld [vmem:[#allocation1] sm:$0xff]
        %1564 = vst [vmem:[#allocation1] ss:$9 sm:$0xff] %v1244
        %1565 = vst [vmem:[%s1288] ss:$9 sm:$0xff] %v1245
        %1566 = vst [vmem:[%s1290] ss:$9 sm:$0xff] %v1246
        %1567 = vst [vmem:[%s1292] ss:$9 sm:$0xff] %v1247
        %1568 = vst [vmem:[%s1294] ss:$9 sm:$0xff] %v1248
        %1569 = vst [vmem:[%s1296] ss:$9 sm:$0xff] %v1249
        %1570 = vst [vmem:[%s1298] ss:$9 sm:$0xff] %v988
        %1571 = vst [vmem:[%s1300] ss:$9 sm:$0xff] %v1250
        %v1572 = vld [vmem:[#allocation1] sm:$0xff]
        %1573 = vst [vmem:[#allocation1] ss:$9 sm:$0xff] %v1251
        %1574 = vst [vmem:[%s1288] ss:$9 sm:$0xff] %v1252
        %1575 = vst [vmem:[%s1290] ss:$9 sm:$0xff] %v1253
        %1576 = vst [vmem:[%s1292] ss:$9 sm:$0xff] %v1254
        %1577 = vst [vmem:[%s1294] ss:$9 sm:$0xff] %v1255
        %1578 = vst [vmem:[%s1296] ss:$9 sm:$0xff] %v1256
        %1579 = vst [vmem:[%s1298] ss:$9 sm:$0xff] %v989
        %1580 = vst [vmem:[%s1300] ss:$9 sm:$0xff] %v990
        %v1581 = vld [vmem:[#allocation1] sm:$0xff]
        %1582 = vst [vmem:[#allocation1] ss:$9 sm:$0xff] %v1257
        %1583 = vst [vmem:[%s1288] ss:$9 sm:$0xff] %v1258
        %1584 = vst [vmem:[%s1290] ss:$9 sm:$0xff] %v1259
        %1585 = vst [vmem:[%s1292] ss:$9 sm:$0xff] %v1260
        %1586 = vst [vmem:[%s1294] ss:$9 sm:$0xff] %v1261
        %1587 = vst [vmem:[%s1296] ss:$9 sm:$0xff] %v1262
        %1588 = vst [vmem:[%s1298] ss:$9 sm:$0xff] %v1263
        %1589 = vst [vmem:[%s1300] ss:$9 sm:$0xff] %v991
        %v1590 = vld [vmem:[#allocation1] sm:$0xff]
        %1591 = vst [vmem:[#allocation1] ss:$9 sm:$0xff] %v1264
        %1592 = vst [vmem:[%s1288] ss:$9 sm:$0xff] %v1265
        %1593 = vst [vmem:[%s1290] ss:$9 sm:$0xff] %v1266
        %1594 = vst [vmem:[%s1292] ss:$9 sm:$0xff] %v1267
        %1595 = vst [vmem:[%s1294] ss:$9 sm:$0xff] %v1268
        %1596 = vst [vmem:[%s1296] ss:$9 sm:$0xff] %v1269
        %1597 = vst [vmem:[%s1298] ss:$9 sm:$0xff] %v1270
        %1598 = vst [vmem:[%s1300] ss:$9 sm:$0xff] %v992
        %v1599 = vld [vmem:[#allocation1] sm:$0xff]
        %1600 = vst [vmem:[#allocation1] ss:$9 sm:$0xff] %v993
        %1601 = vst [vmem:[%s1288] ss:$9 sm:$0xff] %v1271
        %1602 = vst [vmem:[%s1290] ss:$9 sm:$0xff] %v1272
        %1603 = vst [vmem:[%s1292] ss:$9 sm:$0xff] %v1273
        %1604 = vst [vmem:[%s1294] ss:$9 sm:$0xff] %v1274
        %1605 = vst [vmem:[%s1296] ss:$9 sm:$0xff] %v1275
        %1606 = vst [vmem:[%s1298] ss:$9 sm:$0xff] %v1276
        %1607 = vst [vmem:[%s1300] ss:$9 sm:$0xff] %v1277
        %v1608 = vld [vmem:[#allocation1] sm:$0xff]
        %1609 = vst [vmem:[#allocation1] ss:$9 sm:$0xff] %v994
        %1610 = vst [vmem:[%s1288] ss:$9 sm:$0xff] %v1278
        %1611 = vst [vmem:[%s1290] ss:$9 sm:$0xff] %v1279
        %1612 = vst [vmem:[%s1292] ss:$9 sm:$0xff] %v1280
        %1613 = vst [vmem:[%s1294] ss:$9 sm:$0xff] %v1281
        %1614 = vst [vmem:[%s1296] ss:$9 sm:$0xff] %v1282
        %1615 = vst [vmem:[%s1298] ss:$9 sm:$0xff] %v1283
        %1616 = vst [vmem:[%s1300] ss:$9 sm:$0xff] %v1284
        %v1617 = vld [vmem:[#allocation1] sm:$0xff]
        %1618 = vst [vmem:[#allocation1] ss:$9 sm:$0xff] %v995
        %v1619 = vld [vmem:[#allocation1] sm:$0xff]
        %vm1620 = vcmask 130048
        %v1621 = vsel %vm1620, %v1302, 0
        %v1623 = vsel %vm1620, %v1311, 0
        %v1625 = vsel %vm1620, %v1320, 0
        %v1627 = vsel %vm1620, %v1329, 0
        %v1629 = vsel %vm1620, %v1338, 0
        %v1631 = vsel %vm1620, %v1347, 0
        %v1633 = vsel %vm1620, %v1356, 0
        %v1635 = vsel %vm1620, %v1365, 0
        %v1637 = vsel %vm1620, %v1374, 0
        %v1639 = vsel %vm1620, %v1383, 0
        %v1641 = vsel %vm1620, %v1392, 0
        %v1643 = vsel %vm1620, %v1401, 0
        %v1645 = vsel %vm1620, %v1410, 0
        %v1647 = vsel %vm1620, %v1419, 0
        %v1649 = vsel %vm1620, %v1428, 0
        %v1651 = vsel %vm1620, %v1437, 0
        %v1653 = vsel %vm1620, %v1446, 0
        %v1655 = vsel %vm1620, %v1455, 0
        %v1657 = vsel %vm1620, %v1464, 0
        %v1659 = vsel %vm1620, %v1473, 0
        %v1661 = vsel %vm1620, %v1482, 0
        %v1663 = vsel %vm1620, %v1491, 0
        %v1665 = vsel %vm1620, %v1500, 0
        %v1667 = vsel %vm1620, %v1509, 0
        %v1669 = vsel %vm1620, %v1518, 0
        %v1671 = vsel %vm1620, %v1527, 0
        %v1673 = vsel %vm1620, %v1536, 0
        %v1675 = vsel %vm1620, %v1545, 0
        %v1677 = vsel %vm1620, %v1554, 0
        %v1679 = vsel %vm1620, %v1563, 0
        %v1681 = vsel %vm1620, %v1572, 0
        %v1683 = vsel %vm1620, %v1581, 0
        %v1685 = vsel %vm1620, %v1590, 0
        %v1687 = vsel %vm1620, %v1599, 0
        %v1689 = vsel %vm1620, %v1608, 0
        %v1691 = vsel %vm1620, %v1617, 0
        %v1693 = vsel %vm1620, %v1619, 0
        %1695 = vmatpush.msra.mxu0 0.0
        %1696 = vmatpush.msra.mxu0 0.0
        %1697 = vmatpush.msra.mxu0 0.0
        %1698 = vmatpush.msra.mxu0 0.0
        %1699 = vmatpush.msra.mxu0 0.0
        %1700 = vmatpush.msra.mxu0 0.0
        %1701 = vmatpush.msra.mxu0 0.0
        %1702 = vmatpush.msra.mxu0 0.0
        %1703 = vmatpush.msra.mxu0 0.0
        %1704 = vmatpush.msra.mxu0 0.0
        %1705 = vmatpush.msra.mxu0 0.0
        %1706 = vmatpush.msra.mxu0 0.0
        %1707 = vmatpush.msra.mxu0 0.0
        %1708 = vmatpush.msra.mxu0 0.0
        %1709 = vmatpush.msra.mxu0 %v1286
        %1710 = vmatpush.msra.mxu0 %v1285
        %1711 = vmatmul.f32.gmra.mxu0 %v1621
        %v1712 = vpop.f32.mrf.mxu0
        %v1713 = vadd.f32 0.0, %v1712
        %1714 = vmatmul.f32.gmra.mxu0 %v1623
        %v1715 = vpop.f32.mrf.mxu0
        %v1716 = vadd.f32 0.0, %v1715
        %1717 = vmatmul.f32.gmra.mxu0 %v1625
        %v1718 = vpop.f32.mrf.mxu0
        %v1719 = vadd.f32 0.0, %v1718
        %1720 = vmatmul.f32.gmra.mxu0 %v1627
        %v1721 = vpop.f32.mrf.mxu0
        %v1722 = vadd.f32 0.0, %v1721
        %1723 = vmatmul.f32.gmra.mxu0 %v1629
        %v1724 = vpop.f32.mrf.mxu0
        %v1725 = vadd.f32 0.0, %v1724
        %1726 = vmatmul.f32.gmra.mxu0 %v1631
        %v1727 = vpop.f32.mrf.mxu0
        %v1728 = vadd.f32 0.0, %v1727
        %1729 = vmatmul.f32.gmra.mxu0 %v1633
        %v1730 = vpop.f32.mrf.mxu0
        %v1731 = vadd.f32 0.0, %v1730
        %1732 = vmatmul.f32.gmra.mxu0 %v1635
        %v1733 = vpop.f32.mrf.mxu0
        %v1734 = vadd.f32 0.0, %v1733
        %1735 = vmatmul.f32.gmra.mxu0 %v1637
        %v1736 = vpop.f32.mrf.mxu0
        %v1737 = vadd.f32 0.0, %v1736
        %1738 = vmatmul.f32.gmra.mxu0 %v1639
        %v1739 = vpop.f32.mrf.mxu0
        %v1740 = vadd.f32 0.0, %v1739
        %1741 = vmatmul.f32.gmra.mxu0 %v1641
        %v1742 = vpop.f32.mrf.mxu0
        %v1743 = vadd.f32 0.0, %v1742
        %1744 = vmatmul.f32.gmra.mxu0 %v1643
        %v1745 = vpop.f32.mrf.mxu0
        %v1746 = vadd.f32 0.0, %v1745
        %1747 = vmatmul.f32.gmra.mxu0 %v1645
        %v1748 = vpop.f32.mrf.mxu0
        %v1749 = vadd.f32 0.0, %v1748
        %1750 = vmatmul.f32.gmra.mxu0 %v1647
        %v1751 = vpop.f32.mrf.mxu0
        %v1752 = vadd.f32 0.0, %v1751
        %1753 = vmatmul.f32.gmra.mxu0 %v1649
        %v1754 = vpop.f32.mrf.mxu0
        %v1755 = vadd.f32 0.0, %v1754
        %1756 = vmatmul.f32.gmra.mxu0 %v1651
        %v1757 = vpop.f32.mrf.mxu0
        %v1758 = vadd.f32 0.0, %v1757
        %1759 = vmatmul.f32.gmra.mxu0 %v1653
        %v1760 = vpop.f32.mrf.mxu0
        %v1761 = vadd.f32 0.0, %v1760
        %1762 = vmatmul.f32.gmra.mxu0 %v1655
        %v1763 = vpop.f32.mrf.mxu0
        %v1764 = vadd.f32 0.0, %v1763
        %1765 = vmatmul.f32.gmra.mxu0 %v1657
        %v1766 = vpop.f32.mrf.mxu0
        %v1767 = vadd.f32 0.0, %v1766
        %1768 = vmatmul.f32.gmra.mxu0 %v1659
        %v1769 = vpop.f32.mrf.mxu0
        %v1770 = vadd.f32 0.0, %v1769
        %1771 = vmatmul.f32.gmra.mxu0 %v1661
        %v1772 = vpop.f32.mrf.mxu0
        %v1773 = vadd.f32 0.0, %v1772
        %1774 = vmatmul.f32.gmra.mxu0 %v1663
        %v1775 = vpop.f32.mrf.mxu0
        %v1776 = vadd.f32 0.0, %v1775
        %1777 = vmatmul.f32.gmra.mxu0 %v1665
        %v1778 = vpop.f32.mrf.mxu0
        %v1779 = vadd.f32 0.0, %v1778
        %1780 = vmatmul.f32.gmra.mxu0 %v1667
        %v1781 = vpop.f32.mrf.mxu0
        %v1782 = vadd.f32 0.0, %v1781
        %1783 = vmatmul.f32.gmra.mxu0 %v1669
        %v1784 = vpop.f32.mrf.mxu0
        %v1785 = vadd.f32 0.0, %v1784
        %1786 = vmatmul.f32.gmra.mxu0 %v1671
        %v1787 = vpop.f32.mrf.mxu0
        %v1788 = vadd.f32 0.0, %v1787
        %1789 = vmatmul.f32.gmra.mxu0 %v1673
        %v1790 = vpop.f32.mrf.mxu0
        %v1791 = vadd.f32 0.0, %v1790
        %1792 = vmatmul.f32.gmra.mxu0 %v1675
        %v1793 = vpop.f32.mrf.mxu0
        %v1794 = vadd.f32 0.0, %v1793
        %1795 = vmatmul.f32.gmra.mxu0 %v1677
        %v1796 = vpop.f32.mrf.mxu0
        %v1797 = vadd.f32 0.0, %v1796
        %1798 = vmatmul.f32.gmra.mxu0 %v1679
        %v1799 = vpop.f32.mrf.mxu0
        %v1800 = vadd.f32 0.0, %v1799
        %1801 = vmatmul.f32.gmra.mxu0 %v1681
        %v1802 = vpop.f32.mrf.mxu0
        %v1803 = vadd.f32 0.0, %v1802
        %1804 = vmatmul.f32.gmra.mxu0 %v1683
        %v1805 = vpop.f32.mrf.mxu0
        %v1806 = vadd.f32 0.0, %v1805
        %1807 = vmatmul.f32.gmra.mxu0 %v1685
        %v1808 = vpop.f32.mrf.mxu0
        %v1809 = vadd.f32 0.0, %v1808
        %1810 = vmatmul.f32.gmra.mxu0 %v1687
        %v1811 = vpop.f32.mrf.mxu0
        %v1812 = vadd.f32 0.0, %v1811
        %1813 = vmatmul.f32.gmra.mxu0 %v1689
        %v1814 = vpop.f32.mrf.mxu0
        %v1815 = vadd.f32 0.0, %v1814
        %1816 = vmatmul.f32.gmra.mxu0 %v1691
        %v1817 = vpop.f32.mrf.mxu0
        %v1818 = vadd.f32 0.0, %v1817
        %1819 = vmatmul.f32.gmra.mxu0 %v1693
        %v1820 = vpop.f32.mrf.mxu0
        %v1821 = vadd.f32 0.0, %v1820
        %1822 = vdwg.mxu0
        %vm1823 = vcmask 261120
        %v1824 = vsel %vm1823, %v1713, 0.0
        %v1825 = vsel %vm1823, %v1716, 0.0
        %v1826 = vadd.f32 %v1824, %v1825
        %v1827 = vsel %vm1823, %v1719, 0.0
        %v1828 = vadd.f32 %v1826, %v1827
        %v1829 = vsel %vm1823, %v1722, 0.0
        %v1830 = vadd.f32 %v1828, %v1829
        %v1831 = vsel %vm1823, %v1725, 0.0
        %v1832 = vadd.f32 %v1830, %v1831
        %v1833 = vsel %vm1823, %v1728, 0.0
        %v1834 = vadd.f32 %v1832, %v1833
        %v1835 = vsel %vm1823, %v1731, 0.0
        %v1836 = vadd.f32 %v1834, %v1835
        %v1837 = vsel %vm1823, %v1734, 0.0
        %v1838 = vadd.f32 %v1836, %v1837
        %v1839 = vsel %vm1823, %v1737, 0.0
        %v1840 = vadd.f32 %v1838, %v1839
        %v1841 = vsel %vm1823, %v1740, 0.0
        %v1842 = vadd.f32 %v1840, %v1841
        %v1843 = vsel %vm1823, %v1743, 0.0
        %v1844 = vadd.f32 %v1842, %v1843
        %v1845 = vsel %vm1823, %v1746, 0.0
        %v1846 = vadd.f32 %v1844, %v1845
        %v1847 = vsel %vm1823, %v1749, 0.0
        %v1848 = vadd.f32 %v1846, %v1847
        %v1849 = vsel %vm1823, %v1752, 0.0
        %v1850 = vadd.f32 %v1848, %v1849
        %v1851 = vsel %vm1823, %v1755, 0.0
        %v1852 = vadd.f32 %v1850, %v1851
        %v1853 = vsel %vm1823, %v1758, 0.0
        %v1854 = vadd.f32 %v1852, %v1853
        %v1855 = vsel %vm1823, %v1761, 0.0
        %v1856 = vadd.f32 %v1854, %v1855
        %v1857 = vsel %vm1823, %v1764, 0.0
        %v1858 = vadd.f32 %v1856, %v1857
        %v1859 = vsel %vm1823, %v1767, 0.0
        %v1860 = vadd.f32 %v1858, %v1859
        %v1861 = vsel %vm1823, %v1770, 0.0
        %v1862 = vadd.f32 %v1860, %v1861
        %v1863 = vsel %vm1823, %v1773, 0.0
        %v1864 = vadd.f32 %v1862, %v1863
        %v1865 = vsel %vm1823, %v1776, 0.0
        %v1866 = vadd.f32 %v1864, %v1865
        %v1867 = vsel %vm1823, %v1779, 0.0
        %v1868 = vadd.f32 %v1866, %v1867
        %v1869 = vsel %vm1823, %v1782, 0.0
        %v1870 = vadd.f32 %v1868, %v1869
        %v1871 = vsel %vm1823, %v1785, 0.0
        %v1872 = vadd.f32 %v1870, %v1871
        %v1873 = vsel %vm1823, %v1788, 0.0
        %v1874 = vadd.f32 %v1872, %v1873
        %v1875 = vsel %vm1823, %v1791, 0.0
        %v1876 = vadd.f32 %v1874, %v1875
        %v1877 = vsel %vm1823, %v1794, 0.0
        %v1878 = vadd.f32 %v1876, %v1877
        %v1879 = vsel %vm1823, %v1797, 0.0
        %v1880 = vadd.f32 %v1878, %v1879
        %v1881 = vsel %vm1823, %v1800, 0.0
        %v1882 = vadd.f32 %v1880, %v1881
        %v1883 = vsel %vm1823, %v1803, 0.0
        %v1884 = vadd.f32 %v1882, %v1883
        %v1885 = vsel %vm1823, %v1806, 0.0
        %v1886 = vadd.f32 %v1884, %v1885
        %v1887 = vsel %vm1823, %v1809, 0.0
        %v1888 = vadd.f32 %v1886, %v1887
        %v1889 = vsel %vm1823, %v1812, 0.0
        %v1890 = vadd.f32 %v1888, %v1889
        %v1891 = vsel %vm1823, %v1815, 0.0
        %v1892 = vadd.f32 %v1890, %v1891
        %v1893 = vsel %vm1823, %v1818, 0.0
        %v1894 = vadd.f32 %v1892, %v1893
        %vm1895 = vcmask 253952
        %v1896 = vsel %vm1895, %v1821, 0.0
        %v1897 = vadd.f32 %v1894, %v1896
        %v1898 = vrot.slane %v1897, 4
        %v1899 = vadd.f32 %v1897, %v1898
        %v1900 = vrot.slane %v1899, 2
        %v1901 = vadd.f32 %v1899, %v1900
        %v1902 = vrot.slane %v1901, 1
        %v1903 = vadd.f32 %v1901, %v1902
        %v1904 = vmul.f32 %v1713, %v1713
        %v1905 = vmul.f32 %v1716, %v1716
        %v1906 = vmul.f32 %v1719, %v1719
        %v1907 = vmul.f32 %v1722, %v1722
        %v1908 = vmul.f32 %v1725, %v1725
        %v1909 = vmul.f32 %v1728, %v1728
        %v1910 = vmul.f32 %v1731, %v1731
        %v1911 = vmul.f32 %v1734, %v1734
        %v1912 = vmul.f32 %v1737, %v1737
        %v1913 = vmul.f32 %v1740, %v1740
        %v1914 = vmul.f32 %v1743, %v1743
        %v1915 = vmul.f32 %v1746, %v1746
        %v1916 = vmul.f32 %v1749, %v1749
        %v1917 = vmul.f32 %v1752, %v1752
        %v1918 = vmul.f32 %v1755, %v1755
        %v1919 = vmul.f32 %v1758, %v1758
        %v1920 = vmul.f32 %v1761, %v1761
        %v1921 = vmul.f32 %v1764, %v1764
        %v1922 = vmul.f32 %v1767, %v1767
        %v1923 = vmul.f32 %v1770, %v1770
        %v1924 = vmul.f32 %v1773, %v1773
        %v1925 = vmul.f32 %v1776, %v1776
        %v1926 = vmul.f32 %v1779, %v1779
        %v1927 = vmul.f32 %v1782, %v1782
        %v1928 = vmul.f32 %v1785, %v1785
        %v1929 = vmul.f32 %v1788, %v1788
        %v1930 = vmul.f32 %v1791, %v1791
        %v1931 = vmul.f32 %v1794, %v1794
        %v1932 = vmul.f32 %v1797, %v1797
        %v1933 = vmul.f32 %v1800, %v1800
        %v1934 = vmul.f32 %v1803, %v1803
        %v1935 = vmul.f32 %v1806, %v1806
        %v1936 = vmul.f32 %v1809, %v1809
        %v1937 = vmul.f32 %v1812, %v1812
        %v1938 = vmul.f32 %v1815, %v1815
        %v1939 = vmul.f32 %v1818, %v1818
        %v1940 = vmul.f32 %v1821, %v1821
        %v1941 = vsel %vm1823, %v1904, 0.0
        %v1942 = vsel %vm1823, %v1905, 0.0
        %v1943 = vadd.f32 %v1941, %v1942
        %v1944 = vsel %vm1823, %v1906, 0.0
        %v1945 = vadd.f32 %v1943, %v1944
        %v1946 = vsel %vm1823, %v1907, 0.0
        %v1947 = vadd.f32 %v1945, %v1946
        %v1948 = vsel %vm1823, %v1908, 0.0
        %v1949 = vadd.f32 %v1947, %v1948
        %v1950 = vsel %vm1823, %v1909, 0.0
        %v1951 = vadd.f32 %v1949, %v1950
        %v1952 = vsel %vm1823, %v1910, 0.0
        %v1953 = vadd.f32 %v1951, %v1952
        %v1954 = vsel %vm1823, %v1911, 0.0
        %v1955 = vadd.f32 %v1953, %v1954
        %v1956 = vsel %vm1823, %v1912, 0.0
        %v1957 = vadd.f32 %v1955, %v1956
        %v1958 = vsel %vm1823, %v1913, 0.0
        %v1959 = vadd.f32 %v1957, %v1958
        %v1960 = vsel %vm1823, %v1914, 0.0
        %v1961 = vadd.f32 %v1959, %v1960
        %v1962 = vsel %vm1823, %v1915, 0.0
        %v1963 = vadd.f32 %v1961, %v1962
        %v1964 = vsel %vm1823, %v1916, 0.0
        %v1965 = vadd.f32 %v1963, %v1964
        %v1966 = vsel %vm1823, %v1917, 0.0
        %v1967 = vadd.f32 %v1965, %v1966
        %v1968 = vsel %vm1823, %v1918, 0.0
        %v1969 = vadd.f32 %v1967, %v1968
        %v1970 = vsel %vm1823, %v1919, 0.0
        %v1971 = vadd.f32 %v1969, %v1970
        %v1972 = vsel %vm1823, %v1920, 0.0
        %v1973 = vadd.f32 %v1971, %v1972
        %v1974 = vsel %vm1823, %v1921, 0.0
        %v1975 = vadd.f32 %v1973, %v1974
        %v1976 = vsel %vm1823, %v1922, 0.0
        %v1977 = vadd.f32 %v1975, %v1976
        %v1978 = vsel %vm1823, %v1923, 0.0
        %v1979 = vadd.f32 %v1977, %v1978
        %v1980 = vsel %vm1823, %v1924, 0.0
        %v1981 = vadd.f32 %v1979, %v1980
        %v1982 = vsel %vm1823, %v1925, 0.0
        %v1983 = vadd.f32 %v1981, %v1982
        %v1984 = vsel %vm1823, %v1926, 0.0
        %v1985 = vadd.f32 %v1983, %v1984
        %v1986 = vsel %vm1823, %v1927, 0.0
        %v1987 = vadd.f32 %v1985, %v1986
        %v1988 = vsel %vm1823, %v1928, 0.0
        %v1989 = vadd.f32 %v1987, %v1988
        %v1990 = vsel %vm1823, %v1929, 0.0
        %v1991 = vadd.f32 %v1989, %v1990
        %v1992 = vsel %vm1823, %v1930, 0.0
        %v1993 = vadd.f32 %v1991, %v1992
        %v1994 = vsel %vm1823, %v1931, 0.0
        %v1995 = vadd.f32 %v1993, %v1994
        %v1996 = vsel %vm1823, %v1932, 0.0
        %v1997 = vadd.f32 %v1995, %v1996
        %v1998 = vsel %vm1823, %v1933, 0.0
        %v1999 = vadd.f32 %v1997, %v1998
        %v2000 = vsel %vm1823, %v1934, 0.0
        %v2001 = vadd.f32 %v1999, %v2000
        %v2002 = vsel %vm1823, %v1935, 0.0
        %v2003 = vadd.f32 %v2001, %v2002
        %v2004 = vsel %vm1823, %v1936, 0.0
        %v2005 = vadd.f32 %v2003, %v2004
        %v2006 = vsel %vm1823, %v1937, 0.0
        %v2007 = vadd.f32 %v2005, %v2006
        %v2008 = vsel %vm1823, %v1938, 0.0
        %v2009 = vadd.f32 %v2007, %v2008
        %v2010 = vsel %vm1823, %v1939, 0.0
        %v2011 = vadd.f32 %v2009, %v2010
        %v2012 = vsel %vm1895, %v1940, 0.0
        %v2013 = vadd.f32 %v2011, %v2012
        %v2014 = vrot.slane %v2013, 4
        %v2015 = vadd.f32 %v2013, %v2014
        %v2016 = vrot.slane %v2015, 2
        %v2017 = vadd.f32 %v2015, %v2016
        %v2018 = vrot.slane %v2017, 1
        %v2019 = vadd.f32 %v2017, %v2018
        %vm2020 = vcmask 1040384
        %v2021 = vsel %vm2020, %v1903, %v2019
        %vm2022 = vcmask 254976
        %2023 = vst.msk [vmem:[%s171] sm:$0x3] %vm2022, %v2021
        %v2024 = vpack.c.bf16 %v1713, %v1713
        %v2025 = vpack.c.bf16 %v1716, %v1716
        %v2026 = vpack.c.bf16 %v1719, %v1719
        %v2027 = vpack.c.bf16 %v1722, %v1722
        %v2028 = vpack.c.bf16 %v1725, %v1725
        %v2029 = vpack.c.bf16 %v1728, %v1728
        %v2030 = vpack.c.bf16 %v1731, %v1731
        %v2031 = vpack.c.bf16 %v1734, %v1734
        %v2032 = vpack.c.bf16 %v1737, %v1737
        %v2033 = vpack.c.bf16 %v1740, %v1740
        %v2034 = vpack.c.bf16 %v1743, %v1743
        %v2035 = vpack.c.bf16 %v1746, %v1746
        %v2036 = vpack.c.bf16 %v1749, %v1749
        %v2037 = vpack.c.bf16 %v1752, %v1752
        %v2038 = vpack.c.bf16 %v1755, %v1755
        %v2039 = vpack.c.bf16 %v1758, %v1758
        %v2040 = vpack.c.bf16 %v1761, %v1761
        %v2041 = vpack.c.bf16 %v1764, %v1764
        %v2042 = vpack.c.bf16 %v1767, %v1767
        %v2043 = vpack.c.bf16 %v1770, %v1770
        %v2044 = vpack.c.bf16 %v1773, %v1773
        %v2045 = vpack.c.bf16 %v1776, %v1776
        %v2046 = vpack.c.bf16 %v1779, %v1779
        %v2047 = vpack.c.bf16 %v1782, %v1782
        %v2048 = vpack.c.bf16 %v1785, %v1785
        %v2049 = vpack.c.bf16 %v1788, %v1788
        %v2050 = vpack.c.bf16 %v1791, %v1791
        %v2051 = vpack.c.bf16 %v1794, %v1794
        %v2052 = vpack.c.bf16 %v1797, %v1797
        %v2053 = vpack.c.bf16 %v1800, %v1800
        %v2054 = vpack.c.bf16 %v1803, %v1803
        %v2055 = vpack.c.bf16 %v1806, %v1806
        %v2056 = vpack.c.bf16 %v1809, %v1809
        %v2057 = vpack.c.bf16 %v1812, %v1812
        %v2058 = vpack.c.bf16 %v1815, %v1815
        %v2059 = vpack.c.bf16 %v1818, %v1818
        %v2060 = vpack.c.bf16 %v1821, %v1821
        %vm2061 = vcmask 257024
        %2062 = vst.msk [vmem:[%s181] sm:$0xf] %vm2061, %v2024
        %2063 = vst.msk [vmem:[%s181 + $0x4] sm:$0xf] %vm2061, %v2025
        %2064 = vst.msk [vmem:[%s181 + $0x8] sm:$0xf] %vm2061, %v2026
        %2065 = vst.msk [vmem:[%s181 + $0xc] sm:$0xf] %vm2061, %v2027
        %2066 = vst.msk [vmem:[%s181 + $0x10] sm:$0xf] %vm2061, %v2028
        %2067 = vst.msk [vmem:[%s181 + $0x14] sm:$0xf] %vm2061, %v2029
        %2068 = vst.msk [vmem:[%s181 + $0x18] sm:$0xf] %vm2061, %v2030
        %2069 = vst.msk [vmem:[%s181 + $0x1c] sm:$0xf] %vm2061, %v2031
        %2070 = vst.msk [vmem:[%s181 + $0x20] sm:$0xf] %vm2061, %v2032
        %2071 = vst.msk [vmem:[%s181 + $0x24] sm:$0xf] %vm2061, %v2033
        %2072 = vst.msk [vmem:[%s181 + $0x28] sm:$0xf] %vm2061, %v2034
        %2073 = vst.msk [vmem:[%s181 + $0x2c] sm:$0xf] %vm2061, %v2035
        %2074 = vst.msk [vmem:[%s181 + $0x30] sm:$0xf] %vm2061, %v2036
        %2075 = vst.msk [vmem:[%s181 + $0x34] sm:$0xf] %vm2061, %v2037
        %2076 = vst.msk [vmem:[%s181 + $0x38] sm:$0xf] %vm2061, %v2038
        %2077 = vst.msk [vmem:[%s181 + $0x3c] sm:$0xf] %vm2061, %v2039
        %2078 = vst.msk [vmem:[%s181 + $0x40] sm:$0xf] %vm2061, %v2040
        %2079 = vst.msk [vmem:[%s181 + $0x44] sm:$0xf] %vm2061, %v2041
        %2080 = vst.msk [vmem:[%s181 + $0x48] sm:$0xf] %vm2061, %v2042
        %2081 = vst.msk [vmem:[%s181 + $0x4c] sm:$0xf] %vm2061, %v2043
        %2082 = vst.msk [vmem:[%s181 + $0x50] sm:$0xf] %vm2061, %v2044
        %2083 = vst.msk [vmem:[%s181 + $0x54] sm:$0xf] %vm2061, %v2045
        %2084 = vst.msk [vmem:[%s181 + $0x58] sm:$0xf] %vm2061, %v2046
        %2085 = vst.msk [vmem:[%s181 + $0x5c] sm:$0xf] %vm2061, %v2047
        %2086 = vst.msk [vmem:[%s181 + $0x60] sm:$0xf] %vm2061, %v2048
        %2087 = vst.msk [vmem:[%s181 + $0x64] sm:$0xf] %vm2061, %v2049
        %2088 = vst.msk [vmem:[%s181 + $0x68] sm:$0xf] %vm2061, %v2050
        %2089 = vst.msk [vmem:[%s181 + $0x6c] sm:$0xf] %vm2061, %v2051
        %2090 = vst.msk [vmem:[%s181 + $0x70] sm:$0xf] %vm2061, %v2052
        %2091 = vst.msk [vmem:[%s181 + $0x74] sm:$0xf] %vm2061, %v2053
        %2092 = vst.msk [vmem:[%s181 + $0x78] sm:$0xf] %vm2061, %v2054
        %2093 = vst.msk [vmem:[%s181 + $0x7c] sm:$0xf] %vm2061, %v2055
        %2094 = vst.msk [vmem:[%s181 + $0x80] sm:$0xf] %vm2061, %v2056
        %2095 = vst.msk [vmem:[%s181 + $0x84] sm:$0xf] %vm2061, %v2057
        %2096 = vst.msk [vmem:[%s181 + $0x88] sm:$0xf] %vm2061, %v2058
        %2097 = vst.msk [vmem:[%s181 + $0x8c] sm:$0xf] %vm2061, %v2059
        %vm2098 = vcmask 253952
        %vm2099 = vsmask.f32 256
        %vm2100 = vmand %vm2098, %vm2099
        %v2101 = vld [vmem:[%s181 + $0x90] sm:$0x1]
        %v2102 = vsel %vm2100, %v2060, %v2101
        %2103 = vst [vmem:[%s181 + $0x90] sm:$0x1] %v2102
        %p2104 = scmp.lt.s32.totalorder %s18, 1
        %s2105 = scalar_select %p2104, %s18, 1
        %s2106 = smul.addr %s2105, 37
        %s2107 = smul.addr %s2106, 4
        %s2108 = scalar_lea.vmem %s2, %s2107
        %s2109 = sand.u32 %s99, 1
        %s2110 = scalar_lea.sflag [#allocation3], %s2109
        %s2111 = sand.u32 %s99, 1
        %s2112 = smul.addr %s2111, 2
        %s2113 = scalar_lea.vmem [#allocation2], %s2112
        // Predicated region
        $region29: #{tpu_custom_call.1} parent=27 // pred_check
          %p2114 = pneg %p83
        $region30: #{tpu_custom_call.1} parent=27 // pred_check_branch
          %2116 = sbr.rel (%p2114) target = $region32
        $region31: #{tpu_custom_call.1} parent=27 // pred_region
          _
        $region32: #{tpu_custom_call.1} parent=27 // pred_fallthru
          _
        // Predicated region
        $region33: #{tpu_custom_call.1} parent=27 // pred_check
          %p2117 = pneg %p109
        $region34: #{tpu_custom_call.1} parent=27 // pred_check_branch
          %2119 = sbr.rel (%p2117) target = $region36
        $region35: #{tpu_custom_call.1} parent=27 // pred_region
          %2121 = vsyncadd %s2110, 0
          %s2122 = smul.addr %s18, 2
          %s2123 = scalar_lea.hbm %s3, %s2122
          %s2125 = sshll.u32 %s2113, 4
          %s2126 = int_to_ptr.vmem [resolvable:$true] %s2125
          %s2127 = sshll.u32 %s2123, 4
          %s2128 = int_to_ptr.hbm [resolvable:$true] %s2127
          %2130 = dma.vmem_to_hbm [thread:$0]  %s2126, 32, %s2128, %s2110
        $region36: #{tpu_custom_call.1} parent=27 // pred_fallthru
          _
      $region28: #{tpu_custom_call.1} parent=5 // pred_fallthru
        _
      %p2131 = scmp.le.s32.totalorder 2, %s13
      // Predicated region
      $region37: #{tpu_custom_call.1} parent=5 // pred_check
        %p2132 = pneg %p2131
      $region38: #{tpu_custom_call.1} parent=5 // pred_check_branch
        %2134 = sbr.rel (%p2132) target = $region40
      $region39: #{tpu_custom_call.1} parent=5 // pred_region
        %s2135 = ssub.s32 %s13, 2
        // Predicated region
        $region41: #{tpu_custom_call.1} parent=39 // pred_check
          %p2136 = pneg %p89
        $region42: #{tpu_custom_call.1} parent=39 // pred_check_branch
          %2138 = sbr.rel (%p2136) target = $region44
        $region43: #{tpu_custom_call.1} parent=39 // pred_region
          %p2139 = scmp.lt.s32.totalorder %s19, 1
          %s2140 = scalar_select %p2139, %s19, 1
          %s2141 = smul.addr %s2140, 37
          %s2142 = smul.addr %s2141, 4
          %s2143 = scalar_lea.vmem %s2, %s2142
        $region44: #{tpu_custom_call.1} parent=39 // pred_fallthru
          _
        // Predicated region
        $region45: #{tpu_custom_call.1} parent=39 // pred_check
          %p2144 = pneg %p115
        $region46: #{tpu_custom_call.1} parent=39 // pred_check_branch
          %2146 = sbr.rel (%p2144) target = $region48
        $region47: #{tpu_custom_call.1} parent=39 // pred_region
          %s2147 = sand.u32 %s100, 1
          %s2148 = scalar_lea.sflag [#allocation3], %s2147
          %s2149 = sand.u32 %s100, 1
          %s2150 = smul.addr %s2149, 2
          %s2151 = scalar_lea.vmem [#allocation2], %s2150
          %2153 = dma.done %s2148, 32
        $region48: #{tpu_custom_call.1} parent=39 // pred_fallthru
          _
      $region40: #{tpu_custom_call.1} parent=5 // pred_fallthru
        _
    $region6: #{tpu_custom_call.1} parent=1 // loop_footer
      %s17 = sadd.s32 1, %s13
    $region7: #{tpu_custom_call.1} parent=1 // loop_footer_branch
      %12 = sbr.rel target = $region3
    $region8: #{tpu_custom_call.1} parent=1 // loop_exit
      _
    %2154 = vsyncpa [#allocation3], 1
    %s2155 = scalar_lea.sflag [#allocation3], 1
    %2156 = vsyncpa %s2155, 1

</llo_original>
